<compile_context>
chip_gen: v6e
topology: v6e:2x2x1
jax: 0.10.0
libtpu: 0.0.40
codegen_flags: <defaults>
</compile_context>

<pallas_src>
import functools

import jax
import jax.numpy as jnp
from jax import lax
from jax.experimental import pallas as pl
from jax.experimental.pallas import tpu as pltpu


def _residual_block_kernel(x_ref, w1_ref, b1_ref, w2_ref, b2_ref, out_ref, *, H, W):
    """One batch element per grid step.

    x_ref / out_ref : (1, C, H*W)  activations, spatial axis flattened (lane-dense)
    w*_ref          : (C, 9*C)     w[c_out, (dy*3 + dx)*C + c_in]
    b*_ref          : (C, 1)
    """
    C = x_ref.shape[1]
    HW = H * W

    x = x_ref[0].astype(jnp.float32)                       # (C, HW)

    # --- per-tap validity masks for the implicit zero padding ("same" conv). ---
    # Built once from a lane iota (float trick avoids integer div/mod) and shared
    # by both convolutions.
    pix = lax.broadcasted_iota(jnp.int32, (1, HW), 1)
    row = jnp.floor((pix.astype(jnp.float32) + 0.5) / W).astype(jnp.int32)  # pix // W
    col = pix - row * W                                                     # pix %  W

    taps = []                                              # (roll_shift, mask | None)
    for dy in range(3):
        for dx in range(3):
            ry, rx = dy - 1, dx - 1
            conds = []
            if ry < 0: conds.append(row >= -ry)
            if ry > 0: conds.append(row < H - ry)
            if rx < 0: conds.append(col >= -rx)
            if rx > 0: conds.append(col < W - rx)
            if conds:
                m = conds[0]
                for c in conds[1:]:
                    m = m & c
                mask = m.astype(jnp.float32)               # (1, HW)
            else:
                mask = None                                # centre tap: always valid
            offset = ry * W + rx                           # source pixel = p + offset
            taps.append(((-offset) % HW, mask))

    def conv3x3(src, w_ref, b_ref):
        """src: (C, HW) -> (C, HW), bias included. Pure VPU + XLU (no MXU)."""
        wmat = w_ref[...]                                  # (C_out, 9*C_in), one load
        acc = jnp.broadcast_to(b_ref[...], (C, HW))        # bias added once
        for t, (shift, mask) in enumerate(taps):
            if shift == 0:
                shifted = src
            else:
                # shifted[p] = src[p + offset]  (circular; border fixed by mask)
                shifted = pltpu.roll(src, shift, axis=1)   # XLU slot, not a copy
            if mask is not None:
                shifted = shifted * mask                   # zero the padded border
            for ci in range(C):
                k = t * C + ci
                # (C_out, 1) * (1, HW) -> (C_out, HW) broadcast FMA on the VPU.
                acc = acc + wmat[:, k:k + 1] * shifted[ci:ci + 1, :]
        return acc

    y = jnp.maximum(conv3x3(x, w1_ref, b1_ref), 0.0)       # conv1 + bias + ReLU
    z = conv3x3(y, w2_ref, b2_ref)                         # conv2 + bias (in vregs)
    out_ref[0] = (z + x).astype(out_ref.dtype)             # residual add, dense store


def residual_block(x, w1, b1, w2, b2):
    """Fused ResidualBlock forward.

    x      : (B, C, H, W) float32, NCHW (PyTorch layout)
    w1, w2 : (C, C, 3, 3) OIHW (PyTorch nn.Conv2d weight layout)
    b1, b2 : (C,)
    """
    B, C, H, W = x.shape
    HW = H * W

    # HBM-side layout plumbing: activation reshapes are metadata-only (row-major),
    # weight repack is a tiny one-time (C, 9C) transpose+reshape.
    x_flat = x.reshape(B, C, HW)
    w1m = jnp.transpose(w1, (0, 2, 3, 1)).reshape(C, 9 * C)   # (C_out, 9*C_in)
    w2m = jnp.transpose(w2, (0, 2, 3, 1)).reshape(C, 9 * C)
    b1c = b1.reshape(C, 1)
    b2c = b2.reshape(C, 1)

    kernel = functools.partial(_residual_block_kernel, H=H, W=W)
    out_flat = pl.pallas_call(
        kernel,
        out_shape=jax.ShapeDtypeStruct((B, C, HW), x.dtype),
        grid_spec=pltpu.PrefetchScalarGridSpec(
            num_scalar_prefetch=0,
            grid=(B,),                                        # B>=2: sharded on v7x megacore
            in_specs=[
                pl.BlockSpec((1, C, HW), lambda b: (b, 0, 0)),
                pl.BlockSpec((C, 9 * C), lambda b: (0, 0)),
                pl.BlockSpec((C, 1), lambda b: (0, 0)),
                pl.BlockSpec((C, 9 * C), lambda b: (0, 0)),
                pl.BlockSpec((C, 1), lambda b: (0, 0)),
            ],
            out_specs=pl.BlockSpec((1, C, HW), lambda b: (b, 0, 0)),
        ),
        compiler_params=pltpu.CompilerParams(
            dimension_semantics=("parallel",)),
    )(x_flat, w1m, b1c, w2m, b2c)
    return out_flat.reshape(B, C, H, W)


def _reference(x, w1, b1, w2, b2):
    dn = ("NCHW", "OIHW", "NCHW")
    y = lax.conv_general_dilated(x, w1, (1, 1), "SAME", dimension_numbers=dn)
    y = jnp.maximum(y + b1.reshape(1, -1, 1, 1), 0.0)
    y = lax.conv_general_dilated(y, w2, (1, 1), "SAME", dimension_numbers=dn)
    return y + b2.reshape(1, -1, 1, 1) + x


if __name__ == "__main__":
    B, C, H, W = 2, 4, 16, 16        # ResidualBlock(dim=4) on a 16x16 feature map
    key = jax.random.PRNGKey(0)
    kx, kw1, kb1, kw2, kb2 = jax.random.split(key, 5)

    # PyTorch-style NCHW input — used by the kernel directly (no transpose, no pad).
    x = jax.random.normal(kx, (B, C, H, W), dtype=jnp.float32)

    # nn.Conv2d(dim, dim, 3) parameters (OIHW), PyTorch default uniform init bounds.
    fan_in = C * 3 * 3
    bound = 1.0 / (fan_in ** 0.5)
    w1 = jax.random.uniform(kw1, (C, C, 3, 3), jnp.float32, -bound, bound)
    b1 = jax.random.uniform(kb1, (C,), jnp.float32, -bound, bound)
    w2 = jax.random.uniform(kw2, (C, C, 3, 3), jnp.float32, -bound, bound)
    b2 = jax.random.uniform(kb2, (C,), jnp.float32, -bound, bound)

    out = residual_block(x, w1, b1, w2, b2)
    out = jax.block_until_ready(out)

    ref = _reference(x, w1, b1, w2, b2)
    assert out.shape == (B, C, H, W)
    assert jnp.allclose(out, ref, atol=1e-4, rtol=1e-4), "mismatch vs reference"

    print("KERNEL_OK")
</pallas_src>

<mosaic_0001>
module attributes {stable_mosaic.version = 11 : i64} {
  func.func @_residual_block_kernel(%arg0: i32, %arg1: memref<1x4x256xf32, #tpu.memory_space<vmem>>, %arg2: memref<4x36xf32, #tpu.memory_space<vmem>>, %arg3: memref<4x1xf32, #tpu.memory_space<vmem>>, %arg4: memref<4x36xf32, #tpu.memory_space<vmem>>, %arg5: memref<4x1xf32, #tpu.memory_space<vmem>>, %arg6: memref<1x4x256xf32, #tpu.memory_space<vmem>>) attributes {dimension_semantics = [#tpu.dimension_semantics<parallel>], iteration_bounds = array<i64: 2>, scalar_prefetch = 0 : i64, scratch_operands = 0 : i64, tpu.core_type = #tpu.core_type<tc>, window_params = [{transform_indices = @transform_0, window_bounds = array<i64: 1, 4, 256>}, {pipeline_mode = #tpu.pipeline_mode<synchronous>, transform_indices = @transform_1, window_bounds = array<i64: 4, 36>}, {pipeline_mode = #tpu.pipeline_mode<synchronous>, transform_indices = @transform_2, window_bounds = array<i64: 4, 1>}, {pipeline_mode = #tpu.pipeline_mode<synchronous>, transform_indices = @transform_3, window_bounds = array<i64: 4, 36>}, {pipeline_mode = #tpu.pipeline_mode<synchronous>, transform_indices = @transform_4, window_bounds = array<i64: 4, 1>}, {transform_indices = @transform_5, window_bounds = array<i64: 1, 4, 256>}]} {
    %c0 = arith.constant 0 : index
    %c0_0 = arith.constant 0 : index
    %c0_1 = arith.constant 0 : index
    %0 = vector.load %arg1[%c0, %c0_0, %c0_1] : memref<1x4x256xf32, #tpu.memory_space<vmem>>, vector<1x4x256xf32>
    %1 = vector.shape_cast %0 : vector<1x4x256xf32> to vector<4x256xf32>
    %2 = tpu.iota {dimensions = array<i32: 1>} : vector<1x256xi32>
    %3 = arith.sitofp %2 : vector<1x256xi32> to vector<1x256xf32>
    %cst = arith.constant 5.000000e-01 : f32
    %4 = vector.broadcast %cst : f32 to vector<1x256xf32>
    %5 = arith.addf %3, %4 : vector<1x256xf32>
    %cst_2 = arith.constant 1.600000e+01 : f32
    %6 = vector.broadcast %cst_2 : f32 to vector<1x256xf32>
    %7 = arith.divf %5, %6 : vector<1x256xf32>
    %8 = math.floor %7 : vector<1x256xf32>
    %9 = arith.fptosi %8 : vector<1x256xf32> to vector<1x256xi32>
    %c16_i32 = arith.constant 16 : i32
    %10 = vector.broadcast %c16_i32 : i32 to vector<1x256xi32>
    %11 = arith.muli %9, %10 : vector<1x256xi32>
    %12 = arith.subi %2, %11 : vector<1x256xi32>
    %c1_i32 = arith.constant 1 : i32
    %13 = vector.broadcast %c1_i32 : i32 to vector<1x256xi32>
    %14 = arith.cmpi sge, %9, %13 : vector<1x256xi32>
    %c1_i32_3 = arith.constant 1 : i32
    %15 = vector.broadcast %c1_i32_3 : i32 to vector<1x256xi32>
    %16 = arith.cmpi sge, %12, %15 : vector<1x256xi32>
    %17 = arith.andi %14, %16 : vector<1x256xi1>
    %18 = arith.extui %17 : vector<1x256xi1> to vector<1x256xi32>
    %19 = arith.sitofp %18 : vector<1x256xi32> to vector<1x256xf32>
    %c1_i32_4 = arith.constant 1 : i32
    %20 = vector.broadcast %c1_i32_4 : i32 to vector<1x256xi32>
    %21 = arith.cmpi sge, %9, %20 : vector<1x256xi32>
    %22 = arith.extui %21 : vector<1x256xi1> to vector<1x256xi32>
    %23 = arith.sitofp %22 : vector<1x256xi32> to vector<1x256xf32>
    %c1_i32_5 = arith.constant 1 : i32
    %24 = vector.broadcast %c1_i32_5 : i32 to vector<1x256xi32>
    %25 = arith.cmpi sge, %9, %24 : vector<1x256xi32>
    %c15_i32 = arith.constant 15 : i32
    %26 = vector.broadcast %c15_i32 : i32 to vector<1x256xi32>
    %27 = arith.cmpi slt, %12, %26 : vector<1x256xi32>
    %28 = arith.andi %25, %27 : vector<1x256xi1>
    %29 = arith.extui %28 : vector<1x256xi1> to vector<1x256xi32>
    %30 = arith.sitofp %29 : vector<1x256xi32> to vector<1x256xf32>
    %c1_i32_6 = arith.constant 1 : i32
    %31 = vector.broadcast %c1_i32_6 : i32 to vector<1x256xi32>
    %32 = arith.cmpi sge, %12, %31 : vector<1x256xi32>
    %33 = arith.extui %32 : vector<1x256xi1> to vector<1x256xi32>
    %34 = arith.sitofp %33 : vector<1x256xi32> to vector<1x256xf32>
    %c15_i32_7 = arith.constant 15 : i32
    %35 = vector.broadcast %c15_i32_7 : i32 to vector<1x256xi32>
    %36 = arith.cmpi slt, %12, %35 : vector<1x256xi32>
    %37 = arith.extui %36 : vector<1x256xi1> to vector<1x256xi32>
    %38 = arith.sitofp %37 : vector<1x256xi32> to vector<1x256xf32>
    %c15_i32_8 = arith.constant 15 : i32
    %39 = vector.broadcast %c15_i32_8 : i32 to vector<1x256xi32>
    %40 = arith.cmpi slt, %9, %39 : vector<1x256xi32>
    %c1_i32_9 = arith.constant 1 : i32
    %41 = vector.broadcast %c1_i32_9 : i32 to vector<1x256xi32>
    %42 = arith.cmpi sge, %12, %41 : vector<1x256xi32>
    %43 = arith.andi %40, %42 : vector<1x256xi1>
    %44 = arith.extui %43 : vector<1x256xi1> to vector<1x256xi32>
    %45 = arith.sitofp %44 : vector<1x256xi32> to vector<1x256xf32>
    %c15_i32_10 = arith.constant 15 : i32
    %46 = vector.broadcast %c15_i32_10 : i32 to vector<1x256xi32>
    %47 = arith.cmpi slt, %9, %46 : vector<1x256xi32>
    %48 = arith.extui %47 : vector<1x256xi1> to vector<1x256xi32>
    %49 = arith.sitofp %48 : vector<1x256xi32> to vector<1x256xf32>
    %c15_i32_11 = arith.constant 15 : i32
    %50 = vector.broadcast %c15_i32_11 : i32 to vector<1x256xi32>
    %51 = arith.cmpi slt, %9, %50 : vector<1x256xi32>
    %c15_i32_12 = arith.constant 15 : i32
    %52 = vector.broadcast %c15_i32_12 : i32 to vector<1x256xi32>
    %53 = arith.cmpi slt, %12, %52 : vector<1x256xi32>
    %54 = arith.andi %51, %53 : vector<1x256xi1>
    %55 = arith.extui %54 : vector<1x256xi1> to vector<1x256xi32>
    %56 = arith.sitofp %55 : vector<1x256xi32> to vector<1x256xf32>
    %c0_13 = arith.constant 0 : index
    %c0_14 = arith.constant 0 : index
    %57 = vector.load %arg2[%c0_13, %c0_14] : memref<4x36xf32, #tpu.memory_space<vmem>>, vector<4x36xf32>
    %c0_15 = arith.constant 0 : index
    %c0_16 = arith.constant 0 : index
    %58 = vector.load %arg3[%c0_15, %c0_16] : memref<4x1xf32, #tpu.memory_space<vmem>>, vector<4x1xf32>
    %59 = vector.shape_cast %58 : vector<4x1xf32> to vector<4x1xf32>
    %60 = vector.broadcast %59 : vector<4x1xf32> to vector<4x256xf32>
    %c17_i32 = arith.constant 17 : i32
    %61 = tpu.dynamic_rotate %1 by %c17_i32 dim 1 : vector<4x256xf32>, i32 -> vector<4x256xf32>
    %62 = vector.broadcast %19 : vector<1x256xf32> to vector<4x256xf32>
    %63 = arith.mulf %61, %62 : vector<4x256xf32>
    %64 = vector.extract_strided_slice %57 {offsets = [0, 0], sizes = [4, 1], strides = [1, 1]} : vector<4x36xf32> to vector<4x1xf32>
    %65 = vector.extract_strided_slice %63 {offsets = [0, 0], sizes = [1, 256], strides = [1, 1]} : vector<4x256xf32> to vector<1x256xf32>
    %66 = vector.broadcast %64 : vector<4x1xf32> to vector<4x256xf32>
    %67 = vector.broadcast %65 : vector<1x256xf32> to vector<4x256xf32>
    %68 = arith.mulf %66, %67 : vector<4x256xf32>
    %69 = arith.addf %60, %68 : vector<4x256xf32>
    %70 = vector.extract_strided_slice %57 {offsets = [0, 1], sizes = [4, 1], strides = [1, 1]} : vector<4x36xf32> to vector<4x1xf32>
    %71 = vector.extract_strided_slice %63 {offsets = [1, 0], sizes = [1, 256], strides = [1, 1]} : vector<4x256xf32> to vector<1x256xf32>
    %72 = vector.broadcast %70 : vector<4x1xf32> to vector<4x256xf32>
    %73 = vector.broadcast %71 : vector<1x256xf32> to vector<4x256xf32>
    %74 = arith.mulf %72, %73 : vector<4x256xf32>
    %75 = arith.addf %69, %74 : vector<4x256xf32>
    %76 = vector.extract_strided_slice %57 {offsets = [0, 2], sizes = [4, 1], strides = [1, 1]} : vector<4x36xf32> to vector<4x1xf32>
    %77 = vector.extract_strided_slice %63 {offsets = [2, 0], sizes = [1, 256], strides = [1, 1]} : vector<4x256xf32> to vector<1x256xf32>
    %78 = vector.broadcast %76 : vector<4x1xf32> to vector<4x256xf32>
    %79 = vector.broadcast %77 : vector<1x256xf32> to vector<4x256xf32>
    %80 = arith.mulf %78, %79 : vector<4x256xf32>
    %81 = arith.addf %75, %80 : vector<4x256xf32>
    %82 = vector.extract_strided_slice %57 {offsets = [0, 3], sizes = [4, 1], strides = [1, 1]} : vector<4x36xf32> to vector<4x1xf32>
    %83 = vector.extract_strided_slice %63 {offsets = [3, 0], sizes = [1, 256], strides = [1, 1]} : vector<4x256xf32> to vector<1x256xf32>
    %84 = vector.broadcast %82 : vector<4x1xf32> to vector<4x256xf32>
    %85 = vector.broadcast %83 : vector<1x256xf32> to vector<4x256xf32>
    %86 = arith.mulf %84, %85 : vector<4x256xf32>
    %87 = arith.addf %81, %86 : vector<4x256xf32>
    %c16_i32_17 = arith.constant 16 : i32
    %88 = tpu.dynamic_rotate %1 by %c16_i32_17 dim 1 : vector<4x256xf32>, i32 -> vector<4x256xf32>
    %89 = vector.broadcast %23 : vector<1x256xf32> to vector<4x256xf32>
    %90 = arith.mulf %88, %89 : vector<4x256xf32>
    %91 = vector.extract_strided_slice %57 {offsets = [0, 4], sizes = [4, 1], strides = [1, 1]} : vector<4x36xf32> to vector<4x1xf32>
    %92 = vector.extract_strided_slice %90 {offsets = [0, 0], sizes = [1, 256], strides = [1, 1]} : vector<4x256xf32> to vector<1x256xf32>
    %93 = vector.broadcast %91 : vector<4x1xf32> to vector<4x256xf32>
    %94 = vector.broadcast %92 : vector<1x256xf32> to vector<4x256xf32>
    %95 = arith.mulf %93, %94 : vector<4x256xf32>
    %96 = arith.addf %87, %95 : vector<4x256xf32>
    %97 = vector.extract_strided_slice %57 {offsets = [0, 5], sizes = [4, 1], strides = [1, 1]} : vector<4x36xf32> to vector<4x1xf32>
    %98 = vector.extract_strided_slice %90 {offsets = [1, 0], sizes = [1, 256], strides = [1, 1]} : vector<4x256xf32> to vector<1x256xf32>
    %99 = vector.broadcast %97 : vector<4x1xf32> to vector<4x256xf32>
    %100 = vector.broadcast %98 : vector<1x256xf32> to vector<4x256xf32>
    %101 = arith.mulf %99, %100 : vector<4x256xf32>
    %102 = arith.addf %96, %101 : vector<4x256xf32>
    %103 = vector.extract_strided_slice %57 {offsets = [0, 6], sizes = [4, 1], strides = [1, 1]} : vector<4x36xf32> to vector<4x1xf32>
    %104 = vector.extract_strided_slice %90 {offsets = [2, 0], sizes = [1, 256], strides = [1, 1]} : vector<4x256xf32> to vector<1x256xf32>
    %105 = vector.broadcast %103 : vector<4x1xf32> to vector<4x256xf32>
    %106 = vector.broadcast %104 : vector<1x256xf32> to vector<4x256xf32>
    %107 = arith.mulf %105, %106 : vector<4x256xf32>
    %108 = arith.addf %102, %107 : vector<4x256xf32>
    %109 = vector.extract_strided_slice %57 {offsets = [0, 7], sizes = [4, 1], strides = [1, 1]} : vector<4x36xf32> to vector<4x1xf32>
    %110 = vector.extract_strided_slice %90 {offsets = [3, 0], sizes = [1, 256], strides = [1, 1]} : vector<4x256xf32> to vector<1x256xf32>
    %111 = vector.broadcast %109 : vector<4x1xf32> to vector<4x256xf32>
    %112 = vector.broadcast %110 : vector<1x256xf32> to vector<4x256xf32>
    %113 = arith.mulf %111, %112 : vector<4x256xf32>
    %114 = arith.addf %108, %113 : vector<4x256xf32>
    %c15_i32_18 = arith.constant 15 : i32
    %115 = tpu.dynamic_rotate %1 by %c15_i32_18 dim 1 : vector<4x256xf32>, i32 -> vector<4x256xf32>
    %116 = vector.broadcast %30 : vector<1x256xf32> to vector<4x256xf32>
    %117 = arith.mulf %115, %116 : vector<4x256xf32>
    %118 = vector.extract_strided_slice %57 {offsets = [0, 8], sizes = [4, 1], strides = [1, 1]} : vector<4x36xf32> to vector<4x1xf32>
    %119 = vector.extract_strided_slice %117 {offsets = [0, 0], sizes = [1, 256], strides = [1, 1]} : vector<4x256xf32> to vector<1x256xf32>
    %120 = vector.broadcast %118 : vector<4x1xf32> to vector<4x256xf32>
    %121 = vector.broadcast %119 : vector<1x256xf32> to vector<4x256xf32>
    %122 = arith.mulf %120, %121 : vector<4x256xf32>
    %123 = arith.addf %114, %122 : vector<4x256xf32>
    %124 = vector.extract_strided_slice %57 {offsets = [0, 9], sizes = [4, 1], strides = [1, 1]} : vector<4x36xf32> to vector<4x1xf32>
    %125 = vector.extract_strided_slice %117 {offsets = [1, 0], sizes = [1, 256], strides = [1, 1]} : vector<4x256xf32> to vector<1x256xf32>
    %126 = vector.broadcast %124 : vector<4x1xf32> to vector<4x256xf32>
    %127 = vector.broadcast %125 : vector<1x256xf32> to vector<4x256xf32>
    %128 = arith.mulf %126, %127 : vector<4x256xf32>
    %129 = arith.addf %123, %128 : vector<4x256xf32>
    %130 = vector.extract_strided_slice %57 {offsets = [0, 10], sizes = [4, 1], strides = [1, 1]} : vector<4x36xf32> to vector<4x1xf32>
    %131 = vector.extract_strided_slice %117 {offsets = [2, 0], sizes = [1, 256], strides = [1, 1]} : vector<4x256xf32> to vector<1x256xf32>
    %132 = vector.broadcast %130 : vector<4x1xf32> to vector<4x256xf32>
    %133 = vector.broadcast %131 : vector<1x256xf32> to vector<4x256xf32>
    %134 = arith.mulf %132, %133 : vector<4x256xf32>
    %135 = arith.addf %129, %134 : vector<4x256xf32>
    %136 = vector.extract_strided_slice %57 {offsets = [0, 11], sizes = [4, 1], strides = [1, 1]} : vector<4x36xf32> to vector<4x1xf32>
    %137 = vector.extract_strided_slice %117 {offsets = [3, 0], sizes = [1, 256], strides = [1, 1]} : vector<4x256xf32> to vector<1x256xf32>
    %138 = vector.broadcast %136 : vector<4x1xf32> to vector<4x256xf32>
    %139 = vector.broadcast %137 : vector<1x256xf32> to vector<4x256xf32>
    %140 = arith.mulf %138, %139 : vector<4x256xf32>
    %141 = arith.addf %135, %140 : vector<4x256xf32>
    %c1_i32_19 = arith.constant 1 : i32
    %142 = tpu.dynamic_rotate %1 by %c1_i32_19 dim 1 : vector<4x256xf32>, i32 -> vector<4x256xf32>
    %143 = vector.broadcast %34 : vector<1x256xf32> to vector<4x256xf32>
    %144 = arith.mulf %142, %143 : vector<4x256xf32>
    %145 = vector.extract_strided_slice %57 {offsets = [0, 12], sizes = [4, 1], strides = [1, 1]} : vector<4x36xf32> to vector<4x1xf32>
    %146 = vector.extract_strided_slice %144 {offsets = [0, 0], sizes = [1, 256], strides = [1, 1]} : vector<4x256xf32> to vector<1x256xf32>
    %147 = vector.broadcast %145 : vector<4x1xf32> to vector<4x256xf32>
    %148 = vector.broadcast %146 : vector<1x256xf32> to vector<4x256xf32>
    %149 = arith.mulf %147, %148 : vector<4x256xf32>
    %150 = arith.addf %141, %149 : vector<4x256xf32>
    %151 = vector.extract_strided_slice %57 {offsets = [0, 13], sizes = [4, 1], strides = [1, 1]} : vector<4x36xf32> to vector<4x1xf32>
    %152 = vector.extract_strided_slice %144 {offsets = [1, 0], sizes = [1, 256], strides = [1, 1]} : vector<4x256xf32> to vector<1x256xf32>
    %153 = vector.broadcast %151 : vector<4x1xf32> to vector<4x256xf32>
    %154 = vector.broadcast %152 : vector<1x256xf32> to vector<4x256xf32>
    %155 = arith.mulf %153, %154 : vector<4x256xf32>
    %156 = arith.addf %150, %155 : vector<4x256xf32>
    %157 = vector.extract_strided_slice %57 {offsets = [0, 14], sizes = [4, 1], strides = [1, 1]} : vector<4x36xf32> to vector<4x1xf32>
    %158 = vector.extract_strided_slice %144 {offsets = [2, 0], sizes = [1, 256], strides = [1, 1]} : vector<4x256xf32> to vector<1x256xf32>
    %159 = vector.broadcast %157 : vector<4x1xf32> to vector<4x256xf32>
    %160 = vector.broadcast %158 : vector<1x256xf32> to vector<4x256xf32>
    %161 = arith.mulf %159, %160 : vector<4x256xf32>
    %162 = arith.addf %156, %161 : vector<4x256xf32>
    %163 = vector.extract_strided_slice %57 {offsets = [0, 15], sizes = [4, 1], strides = [1, 1]} : vector<4x36xf32> to vector<4x1xf32>
    %164 = vector.extract_strided_slice %144 {offsets = [3, 0], sizes = [1, 256], strides = [1, 1]} : vector<4x256xf32> to vector<1x256xf32>
    %165 = vector.broadcast %163 : vector<4x1xf32> to vector<4x256xf32>
    %166 = vector.broadcast %164 : vector<1x256xf32> to vector<4x256xf32>
    %167 = arith.mulf %165, %166 : vector<4x256xf32>
    %168 = arith.addf %162, %167 : vector<4x256xf32>
    %169 = vector.extract_strided_slice %57 {offsets = [0, 16], sizes = [4, 1], strides = [1, 1]} : vector<4x36xf32> to vector<4x1xf32>
    %170 = vector.extract_strided_slice %1 {offsets = [0, 0], sizes = [1, 256], strides = [1, 1]} : vector<4x256xf32> to vector<1x256xf32>
    %171 = vector.broadcast %169 : vector<4x1xf32> to vector<4x256xf32>
    %172 = vector.broadcast %170 : vector<1x256xf32> to vector<4x256xf32>
    %173 = arith.mulf %171, %172 : vector<4x256xf32>
    %174 = arith.addf %168, %173 : vector<4x256xf32>
    %175 = vector.extract_strided_slice %57 {offsets = [0, 17], sizes = [4, 1], strides = [1, 1]} : vector<4x36xf32> to vector<4x1xf32>
    %176 = vector.extract_strided_slice %1 {offsets = [1, 0], sizes = [1, 256], strides = [1, 1]} : vector<4x256xf32> to vector<1x256xf32>
    %177 = vector.broadcast %175 : vector<4x1xf32> to vector<4x256xf32>
    %178 = vector.broadcast %176 : vector<1x256xf32> to vector<4x256xf32>
    %179 = arith.mulf %177, %178 : vector<4x256xf32>
    %180 = arith.addf %174, %179 : vector<4x256xf32>
    %181 = vector.extract_strided_slice %57 {offsets = [0, 18], sizes = [4, 1], strides = [1, 1]} : vector<4x36xf32> to vector<4x1xf32>
    %182 = vector.extract_strided_slice %1 {offsets = [2, 0], sizes = [1, 256], strides = [1, 1]} : vector<4x256xf32> to vector<1x256xf32>
    %183 = vector.broadcast %181 : vector<4x1xf32> to vector<4x256xf32>
    %184 = vector.broadcast %182 : vector<1x256xf32> to vector<4x256xf32>
    %185 = arith.mulf %183, %184 : vector<4x256xf32>
    %186 = arith.addf %180, %185 : vector<4x256xf32>
    %187 = vector.extract_strided_slice %57 {offsets = [0, 19], sizes = [4, 1], strides = [1, 1]} : vector<4x36xf32> to vector<4x1xf32>
    %188 = vector.extract_strided_slice %1 {offsets = [3, 0], sizes = [1, 256], strides = [1, 1]} : vector<4x256xf32> to vector<1x256xf32>
    %189 = vector.broadcast %187 : vector<4x1xf32> to vector<4x256xf32>
    %190 = vector.broadcast %188 : vector<1x256xf32> to vector<4x256xf32>
    %191 = arith.mulf %189, %190 : vector<4x256xf32>
    %192 = arith.addf %186, %191 : vector<4x256xf32>
    %c255_i32 = arith.constant 255 : i32
    %193 = tpu.dynamic_rotate %1 by %c255_i32 dim 1 : vector<4x256xf32>, i32 -> vector<4x256xf32>
    %194 = vector.broadcast %38 : vector<1x256xf32> to vector<4x256xf32>
    %195 = arith.mulf %193, %194 : vector<4x256xf32>
    %196 = vector.extract_strided_slice %57 {offsets = [0, 20], sizes = [4, 1], strides = [1, 1]} : vector<4x36xf32> to vector<4x1xf32>
    %197 = vector.extract_strided_slice %195 {offsets = [0, 0], sizes = [1, 256], strides = [1, 1]} : vector<4x256xf32> to vector<1x256xf32>
    %198 = vector.broadcast %196 : vector<4x1xf32> to vector<4x256xf32>
    %199 = vector.broadcast %197 : vector<1x256xf32> to vector<4x256xf32>
    %200 = arith.mulf %198, %199 : vector<4x256xf32>
    %201 = arith.addf %192, %200 : vector<4x256xf32>
    %202 = vector.extract_strided_slice %57 {offsets = [0, 21], sizes = [4, 1], strides = [1, 1]} : vector<4x36xf32> to vector<4x1xf32>
    %203 = vector.extract_strided_slice %195 {offsets = [1, 0], sizes = [1, 256], strides = [1, 1]} : vector<4x256xf32> to vector<1x256xf32>
    %204 = vector.broadcast %202 : vector<4x1xf32> to vector<4x256xf32>
    %205 = vector.broadcast %203 : vector<1x256xf32> to vector<4x256xf32>
    %206 = arith.mulf %204, %205 : vector<4x256xf32>
    %207 = arith.addf %201, %206 : vector<4x256xf32>
    %208 = vector.extract_strided_slice %57 {offsets = [0, 22], sizes = [4, 1], strides = [1, 1]} : vector<4x36xf32> to vector<4x1xf32>
    %209 = vector.extract_strided_slice %195 {offsets = [2, 0], sizes = [1, 256], strides = [1, 1]} : vector<4x256xf32> to vector<1x256xf32>
    %210 = vector.broadcast %208 : vector<4x1xf32> to vector<4x256xf32>
    %211 = vector.broadcast %209 : vector<1x256xf32> to vector<4x256xf32>
    %212 = arith.mulf %210, %211 : vector<4x256xf32>
    %213 = arith.addf %207, %212 : vector<4x256xf32>
    %214 = vector.extract_strided_slice %57 {offsets = [0, 23], sizes = [4, 1], strides = [1, 1]} : vector<4x36xf32> to vector<4x1xf32>
    %215 = vector.extract_strided_slice %195 {offsets = [3, 0], sizes = [1, 256], strides = [1, 1]} : vector<4x256xf32> to vector<1x256xf32>
    %216 = vector.broadcast %214 : vector<4x1xf32> to vector<4x256xf32>
    %217 = vector.broadcast %215 : vector<1x256xf32> to vector<4x256xf32>
    %218 = arith.mulf %216, %217 : vector<4x256xf32>
    %219 = arith.addf %213, %218 : vector<4x256xf32>
    %c241_i32 = arith.constant 241 : i32
    %220 = tpu.dynamic_rotate %1 by %c241_i32 dim 1 : vector<4x256xf32>, i32 -> vector<4x256xf32>
    %221 = vector.broadcast %45 : vector<1x256xf32> to vector<4x256xf32>
    %222 = arith.mulf %220, %221 : vector<4x256xf32>
    %223 = vector.extract_strided_slice %57 {offsets = [0, 24], sizes = [4, 1], strides = [1, 1]} : vector<4x36xf32> to vector<4x1xf32>
    %224 = vector.extract_strided_slice %222 {offsets = [0, 0], sizes = [1, 256], strides = [1, 1]} : vector<4x256xf32> to vector<1x256xf32>
    %225 = vector.broadcast %223 : vector<4x1xf32> to vector<4x256xf32>
    %226 = vector.broadcast %224 : vector<1x256xf32> to vector<4x256xf32>
    %227 = arith.mulf %225, %226 : vector<4x256xf32>
    %228 = arith.addf %219, %227 : vector<4x256xf32>
    %229 = vector.extract_strided_slice %57 {offsets = [0, 25], sizes = [4, 1], strides = [1, 1]} : vector<4x36xf32> to vector<4x1xf32>
    %230 = vector.extract_strided_slice %222 {offsets = [1, 0], sizes = [1, 256], strides = [1, 1]} : vector<4x256xf32> to vector<1x256xf32>
    %231 = vector.broadcast %229 : vector<4x1xf32> to vector<4x256xf32>
    %232 = vector.broadcast %230 : vector<1x256xf32> to vector<4x256xf32>
    %233 = arith.mulf %231, %232 : vector<4x256xf32>
    %234 = arith.addf %228, %233 : vector<4x256xf32>
    %235 = vector.extract_strided_slice %57 {offsets = [0, 26], sizes = [4, 1], strides = [1, 1]} : vector<4x36xf32> to vector<4x1xf32>
    %236 = vector.extract_strided_slice %222 {offsets = [2, 0], sizes = [1, 256], strides = [1, 1]} : vector<4x256xf32> to vector<1x256xf32>
    %237 = vector.broadcast %235 : vector<4x1xf32> to vector<4x256xf32>
    %238 = vector.broadcast %236 : vector<1x256xf32> to vector<4x256xf32>
    %239 = arith.mulf %237, %238 : vector<4x256xf32>
    %240 = arith.addf %234, %239 : vector<4x256xf32>
    %241 = vector.extract_strided_slice %57 {offsets = [0, 27], sizes = [4, 1], strides = [1, 1]} : vector<4x36xf32> to vector<4x1xf32>
    %242 = vector.extract_strided_slice %222 {offsets = [3, 0], sizes = [1, 256], strides = [1, 1]} : vector<4x256xf32> to vector<1x256xf32>
    %243 = vector.broadcast %241 : vector<4x1xf32> to vector<4x256xf32>
    %244 = vector.broadcast %242 : vector<1x256xf32> to vector<4x256xf32>
    %245 = arith.mulf %243, %244 : vector<4x256xf32>
    %246 = arith.addf %240, %245 : vector<4x256xf32>
    %c240_i32 = arith.constant 240 : i32
    %247 = tpu.dynamic_rotate %1 by %c240_i32 dim 1 : vector<4x256xf32>, i32 -> vector<4x256xf32>
    %248 = vector.broadcast %49 : vector<1x256xf32> to vector<4x256xf32>
    %249 = arith.mulf %247, %248 : vector<4x256xf32>
    %250 = vector.extract_strided_slice %57 {offsets = [0, 28], sizes = [4, 1], strides = [1, 1]} : vector<4x36xf32> to vector<4x1xf32>
    %251 = vector.extract_strided_slice %249 {offsets = [0, 0], sizes = [1, 256], strides = [1, 1]} : vector<4x256xf32> to vector<1x256xf32>
    %252 = vector.broadcast %250 : vector<4x1xf32> to vector<4x256xf32>
    %253 = vector.broadcast %251 : vector<1x256xf32> to vector<4x256xf32>
    %254 = arith.mulf %252, %253 : vector<4x256xf32>
    %255 = arith.addf %246, %254 : vector<4x256xf32>
    %256 = vector.extract_strided_slice %57 {offsets = [0, 29], sizes = [4, 1], strides = [1, 1]} : vector<4x36xf32> to vector<4x1xf32>
    %257 = vector.extract_strided_slice %249 {offsets = [1, 0], sizes = [1, 256], strides = [1, 1]} : vector<4x256xf32> to vector<1x256xf32>
    %258 = vector.broadcast %256 : vector<4x1xf32> to vector<4x256xf32>
    %259 = vector.broadcast %257 : vector<1x256xf32> to vector<4x256xf32>
    %260 = arith.mulf %258, %259 : vector<4x256xf32>
    %261 = arith.addf %255, %260 : vector<4x256xf32>
    %262 = vector.extract_strided_slice %57 {offsets = [0, 30], sizes = [4, 1], strides = [1, 1]} : vector<4x36xf32> to vector<4x1xf32>
    %263 = vector.extract_strided_slice %249 {offsets = [2, 0], sizes = [1, 256], strides = [1, 1]} : vector<4x256xf32> to vector<1x256xf32>
    %264 = vector.broadcast %262 : vector<4x1xf32> to vector<4x256xf32>
    %265 = vector.broadcast %263 : vector<1x256xf32> to vector<4x256xf32>
    %266 = arith.mulf %264, %265 : vector<4x256xf32>
    %267 = arith.addf %261, %266 : vector<4x256xf32>
    %268 = vector.extract_strided_slice %57 {offsets = [0, 31], sizes = [4, 1], strides = [1, 1]} : vector<4x36xf32> to vector<4x1xf32>
    %269 = vector.extract_strided_slice %249 {offsets = [3, 0], sizes = [1, 256], strides = [1, 1]} : vector<4x256xf32> to vector<1x256xf32>
    %270 = vector.broadcast %268 : vector<4x1xf32> to vector<4x256xf32>
    %271 = vector.broadcast %269 : vector<1x256xf32> to vector<4x256xf32>
    %272 = arith.mulf %270, %271 : vector<4x256xf32>
    %273 = arith.addf %267, %272 : vector<4x256xf32>
    %c239_i32 = arith.constant 239 : i32
    %274 = tpu.dynamic_rotate %1 by %c239_i32 dim 1 : vector<4x256xf32>, i32 -> vector<4x256xf32>
    %275 = vector.broadcast %56 : vector<1x256xf32> to vector<4x256xf32>
    %276 = arith.mulf %274, %275 : vector<4x256xf32>
    %277 = vector.extract_strided_slice %57 {offsets = [0, 32], sizes = [4, 1], strides = [1, 1]} : vector<4x36xf32> to vector<4x1xf32>
    %278 = vector.extract_strided_slice %276 {offsets = [0, 0], sizes = [1, 256], strides = [1, 1]} : vector<4x256xf32> to vector<1x256xf32>
    %279 = vector.broadcast %277 : vector<4x1xf32> to vector<4x256xf32>
    %280 = vector.broadcast %278 : vector<1x256xf32> to vector<4x256xf32>
    %281 = arith.mulf %279, %280 : vector<4x256xf32>
    %282 = arith.addf %273, %281 : vector<4x256xf32>
    %283 = vector.extract_strided_slice %57 {offsets = [0, 33], sizes = [4, 1], strides = [1, 1]} : vector<4x36xf32> to vector<4x1xf32>
    %284 = vector.extract_strided_slice %276 {offsets = [1, 0], sizes = [1, 256], strides = [1, 1]} : vector<4x256xf32> to vector<1x256xf32>
    %285 = vector.broadcast %283 : vector<4x1xf32> to vector<4x256xf32>
    %286 = vector.broadcast %284 : vector<1x256xf32> to vector<4x256xf32>
    %287 = arith.mulf %285, %286 : vector<4x256xf32>
    %288 = arith.addf %282, %287 : vector<4x256xf32>
    %289 = vector.extract_strided_slice %57 {offsets = [0, 34], sizes = [4, 1], strides = [1, 1]} : vector<4x36xf32> to vector<4x1xf32>
    %290 = vector.extract_strided_slice %276 {offsets = [2, 0], sizes = [1, 256], strides = [1, 1]} : vector<4x256xf32> to vector<1x256xf32>
    %291 = vector.broadcast %289 : vector<4x1xf32> to vector<4x256xf32>
    %292 = vector.broadcast %290 : vector<1x256xf32> to vector<4x256xf32>
    %293 = arith.mulf %291, %292 : vector<4x256xf32>
    %294 = arith.addf %288, %293 : vector<4x256xf32>
    %295 = vector.extract_strided_slice %57 {offsets = [0, 35], sizes = [4, 1], strides = [1, 1]} : vector<4x36xf32> to vector<4x1xf32>
    %296 = vector.extract_strided_slice %276 {offsets = [3, 0], sizes = [1, 256], strides = [1, 1]} : vector<4x256xf32> to vector<1x256xf32>
    %297 = vector.broadcast %295 : vector<4x1xf32> to vector<4x256xf32>
    %298 = vector.broadcast %296 : vector<1x256xf32> to vector<4x256xf32>
    %299 = arith.mulf %297, %298 : vector<4x256xf32>
    %300 = arith.addf %294, %299 : vector<4x256xf32>
    %cst_20 = arith.constant 0.000000e+00 : f32
    %301 = vector.broadcast %cst_20 : f32 to vector<4x256xf32>
    %302 = arith.maximumf %300, %301 : vector<4x256xf32>
    %c0_21 = arith.constant 0 : index
    %c0_22 = arith.constant 0 : index
    %303 = vector.load %arg4[%c0_21, %c0_22] : memref<4x36xf32, #tpu.memory_space<vmem>>, vector<4x36xf32>
    %c0_23 = arith.constant 0 : index
    %c0_24 = arith.constant 0 : index
    %304 = vector.load %arg5[%c0_23, %c0_24] : memref<4x1xf32, #tpu.memory_space<vmem>>, vector<4x1xf32>
    %305 = vector.shape_cast %304 : vector<4x1xf32> to vector<4x1xf32>
    %306 = vector.broadcast %305 : vector<4x1xf32> to vector<4x256xf32>
    %c17_i32_25 = arith.constant 17 : i32
    %307 = tpu.dynamic_rotate %302 by %c17_i32_25 dim 1 : vector<4x256xf32>, i32 -> vector<4x256xf32>
    %308 = vector.broadcast %19 : vector<1x256xf32> to vector<4x256xf32>
    %309 = arith.mulf %307, %308 : vector<4x256xf32>
    %310 = vector.extract_strided_slice %303 {offsets = [0, 0], sizes = [4, 1], strides = [1, 1]} : vector<4x36xf32> to vector<4x1xf32>
    %311 = vector.extract_strided_slice %309 {offsets = [0, 0], sizes = [1, 256], strides = [1, 1]} : vector<4x256xf32> to vector<1x256xf32>
    %312 = vector.broadcast %310 : vector<4x1xf32> to vector<4x256xf32>
    %313 = vector.broadcast %311 : vector<1x256xf32> to vector<4x256xf32>
    %314 = arith.mulf %312, %313 : vector<4x256xf32>
    %315 = arith.addf %306, %314 : vector<4x256xf32>
    %316 = vector.extract_strided_slice %303 {offsets = [0, 1], sizes = [4, 1], strides = [1, 1]} : vector<4x36xf32> to vector<4x1xf32>
    %317 = vector.extract_strided_slice %309 {offsets = [1, 0], sizes = [1, 256], strides = [1, 1]} : vector<4x256xf32> to vector<1x256xf32>
    %318 = vector.broadcast %316 : vector<4x1xf32> to vector<4x256xf32>
    %319 = vector.broadcast %317 : vector<1x256xf32> to vector<4x256xf32>
    %320 = arith.mulf %318, %319 : vector<4x256xf32>
    %321 = arith.addf %315, %320 : vector<4x256xf32>
    %322 = vector.extract_strided_slice %303 {offsets = [0, 2], sizes = [4, 1], strides = [1, 1]} : vector<4x36xf32> to vector<4x1xf32>
    %323 = vector.extract_strided_slice %309 {offsets = [2, 0], sizes = [1, 256], strides = [1, 1]} : vector<4x256xf32> to vector<1x256xf32>
    %324 = vector.broadcast %322 : vector<4x1xf32> to vector<4x256xf32>
    %325 = vector.broadcast %323 : vector<1x256xf32> to vector<4x256xf32>
    %326 = arith.mulf %324, %325 : vector<4x256xf32>
    %327 = arith.addf %321, %326 : vector<4x256xf32>
    %328 = vector.extract_strided_slice %303 {offsets = [0, 3], sizes = [4, 1], strides = [1, 1]} : vector<4x36xf32> to vector<4x1xf32>
    %329 = vector.extract_strided_slice %309 {offsets = [3, 0], sizes = [1, 256], strides = [1, 1]} : vector<4x256xf32> to vector<1x256xf32>
    %330 = vector.broadcast %328 : vector<4x1xf32> to vector<4x256xf32>
    %331 = vector.broadcast %329 : vector<1x256xf32> to vector<4x256xf32>
    %332 = arith.mulf %330, %331 : vector<4x256xf32>
    %333 = arith.addf %327, %332 : vector<4x256xf32>
    %c16_i32_26 = arith.constant 16 : i32
    %334 = tpu.dynamic_rotate %302 by %c16_i32_26 dim 1 : vector<4x256xf32>, i32 -> vector<4x256xf32>
    %335 = vector.broadcast %23 : vector<1x256xf32> to vector<4x256xf32>
    %336 = arith.mulf %334, %335 : vector<4x256xf32>
    %337 = vector.extract_strided_slice %303 {offsets = [0, 4], sizes = [4, 1], strides = [1, 1]} : vector<4x36xf32> to vector<4x1xf32>
    %338 = vector.extract_strided_slice %336 {offsets = [0, 0], sizes = [1, 256], strides = [1, 1]} : vector<4x256xf32> to vector<1x256xf32>
    %339 = vector.broadcast %337 : vector<4x1xf32> to vector<4x256xf32>
    %340 = vector.broadcast %338 : vector<1x256xf32> to vector<4x256xf32>
    %341 = arith.mulf %339, %340 : vector<4x256xf32>
    %342 = arith.addf %333, %341 : vector<4x256xf32>
    %343 = vector.extract_strided_slice %303 {offsets = [0, 5], sizes = [4, 1], strides = [1, 1]} : vector<4x36xf32> to vector<4x1xf32>
    %344 = vector.extract_strided_slice %336 {offsets = [1, 0], sizes = [1, 256], strides = [1, 1]} : vector<4x256xf32> to vector<1x256xf32>
    %345 = vector.broadcast %343 : vector<4x1xf32> to vector<4x256xf32>
    %346 = vector.broadcast %344 : vector<1x256xf32> to vector<4x256xf32>
    %347 = arith.mulf %345, %346 : vector<4x256xf32>
    %348 = arith.addf %342, %347 : vector<4x256xf32>
    %349 = vector.extract_strided_slice %303 {offsets = [0, 6], sizes = [4, 1], strides = [1, 1]} : vector<4x36xf32> to vector<4x1xf32>
    %350 = vector.extract_strided_slice %336 {offsets = [2, 0], sizes = [1, 256], strides = [1, 1]} : vector<4x256xf32> to vector<1x256xf32>
    %351 = vector.broadcast %349 : vector<4x1xf32> to vector<4x256xf32>
    %352 = vector.broadcast %350 : vector<1x256xf32> to vector<4x256xf32>
    %353 = arith.mulf %351, %352 : vector<4x256xf32>
    %354 = arith.addf %348, %353 : vector<4x256xf32>
    %355 = vector.extract_strided_slice %303 {offsets = [0, 7], sizes = [4, 1], strides = [1, 1]} : vector<4x36xf32> to vector<4x1xf32>
    %356 = vector.extract_strided_slice %336 {offsets = [3, 0], sizes = [1, 256], strides = [1, 1]} : vector<4x256xf32> to vector<1x256xf32>
    %357 = vector.broadcast %355 : vector<4x1xf32> to vector<4x256xf32>
    %358 = vector.broadcast %356 : vector<1x256xf32> to vector<4x256xf32>
    %359 = arith.mulf %357, %358 : vector<4x256xf32>
    %360 = arith.addf %354, %359 : vector<4x256xf32>
    %c15_i32_27 = arith.constant 15 : i32
    %361 = tpu.dynamic_rotate %302 by %c15_i32_27 dim 1 : vector<4x256xf32>, i32 -> vector<4x256xf32>
    %362 = vector.broadcast %30 : vector<1x256xf32> to vector<4x256xf32>
    %363 = arith.mulf %361, %362 : vector<4x256xf32>
    %364 = vector.extract_strided_slice %303 {offsets = [0, 8], sizes = [4, 1], strides = [1, 1]} : vector<4x36xf32> to vector<4x1xf32>
    %365 = vector.extract_strided_slice %363 {offsets = [0, 0], sizes = [1, 256], strides = [1, 1]} : vector<4x256xf32> to vector<1x256xf32>
    %366 = vector.broadcast %364 : vector<4x1xf32> to vector<4x256xf32>
    %367 = vector.broadcast %365 : vector<1x256xf32> to vector<4x256xf32>
    %368 = arith.mulf %366, %367 : vector<4x256xf32>
    %369 = arith.addf %360, %368 : vector<4x256xf32>
    %370 = vector.extract_strided_slice %303 {offsets = [0, 9], sizes = [4, 1], strides = [1, 1]} : vector<4x36xf32> to vector<4x1xf32>
    %371 = vector.extract_strided_slice %363 {offsets = [1, 0], sizes = [1, 256], strides = [1, 1]} : vector<4x256xf32> to vector<1x256xf32>
    %372 = vector.broadcast %370 : vector<4x1xf32> to vector<4x256xf32>
    %373 = vector.broadcast %371 : vector<1x256xf32> to vector<4x256xf32>
    %374 = arith.mulf %372, %373 : vector<4x256xf32>
    %375 = arith.addf %369, %374 : vector<4x256xf32>
    %376 = vector.extract_strided_slice %303 {offsets = [0, 10], sizes = [4, 1], strides = [1, 1]} : vector<4x36xf32> to vector<4x1xf32>
    %377 = vector.extract_strided_slice %363 {offsets = [2, 0], sizes = [1, 256], strides = [1, 1]} : vector<4x256xf32> to vector<1x256xf32>
    %378 = vector.broadcast %376 : vector<4x1xf32> to vector<4x256xf32>
    %379 = vector.broadcast %377 : vector<1x256xf32> to vector<4x256xf32>
    %380 = arith.mulf %378, %379 : vector<4x256xf32>
    %381 = arith.addf %375, %380 : vector<4x256xf32>
    %382 = vector.extract_strided_slice %303 {offsets = [0, 11], sizes = [4, 1], strides = [1, 1]} : vector<4x36xf32> to vector<4x1xf32>
    %383 = vector.extract_strided_slice %363 {offsets = [3, 0], sizes = [1, 256], strides = [1, 1]} : vector<4x256xf32> to vector<1x256xf32>
    %384 = vector.broadcast %382 : vector<4x1xf32> to vector<4x256xf32>
    %385 = vector.broadcast %383 : vector<1x256xf32> to vector<4x256xf32>
    %386 = arith.mulf %384, %385 : vector<4x256xf32>
    %387 = arith.addf %381, %386 : vector<4x256xf32>
    %c1_i32_28 = arith.constant 1 : i32
    %388 = tpu.dynamic_rotate %302 by %c1_i32_28 dim 1 : vector<4x256xf32>, i32 -> vector<4x256xf32>
    %389 = vector.broadcast %34 : vector<1x256xf32> to vector<4x256xf32>
    %390 = arith.mulf %388, %389 : vector<4x256xf32>
    %391 = vector.extract_strided_slice %303 {offsets = [0, 12], sizes = [4, 1], strides = [1, 1]} : vector<4x36xf32> to vector<4x1xf32>
    %392 = vector.extract_strided_slice %390 {offsets = [0, 0], sizes = [1, 256], strides = [1, 1]} : vector<4x256xf32> to vector<1x256xf32>
    %393 = vector.broadcast %391 : vector<4x1xf32> to vector<4x256xf32>
    %394 = vector.broadcast %392 : vector<1x256xf32> to vector<4x256xf32>
    %395 = arith.mulf %393, %394 : vector<4x256xf32>
    %396 = arith.addf %387, %395 : vector<4x256xf32>
    %397 = vector.extract_strided_slice %303 {offsets = [0, 13], sizes = [4, 1], strides = [1, 1]} : vector<4x36xf32> to vector<4x1xf32>
    %398 = vector.extract_strided_slice %390 {offsets = [1, 0], sizes = [1, 256], strides = [1, 1]} : vector<4x256xf32> to vector<1x256xf32>
    %399 = vector.broadcast %397 : vector<4x1xf32> to vector<4x256xf32>
    %400 = vector.broadcast %398 : vector<1x256xf32> to vector<4x256xf32>
    %401 = arith.mulf %399, %400 : vector<4x256xf32>
    %402 = arith.addf %396, %401 : vector<4x256xf32>
    %403 = vector.extract_strided_slice %303 {offsets = [0, 14], sizes = [4, 1], strides = [1, 1]} : vector<4x36xf32> to vector<4x1xf32>
    %404 = vector.extract_strided_slice %390 {offsets = [2, 0], sizes = [1, 256], strides = [1, 1]} : vector<4x256xf32> to vector<1x256xf32>
    %405 = vector.broadcast %403 : vector<4x1xf32> to vector<4x256xf32>
    %406 = vector.broadcast %404 : vector<1x256xf32> to vector<4x256xf32>
    %407 = arith.mulf %405, %406 : vector<4x256xf32>
    %408 = arith.addf %402, %407 : vector<4x256xf32>
    %409 = vector.extract_strided_slice %303 {offsets = [0, 15], sizes = [4, 1], strides = [1, 1]} : vector<4x36xf32> to vector<4x1xf32>
    %410 = vector.extract_strided_slice %390 {offsets = [3, 0], sizes = [1, 256], strides = [1, 1]} : vector<4x256xf32> to vector<1x256xf32>
    %411 = vector.broadcast %409 : vector<4x1xf32> to vector<4x256xf32>
    %412 = vector.broadcast %410 : vector<1x256xf32> to vector<4x256xf32>
    %413 = arith.mulf %411, %412 : vector<4x256xf32>
    %414 = arith.addf %408, %413 : vector<4x256xf32>
    %415 = vector.extract_strided_slice %303 {offsets = [0, 16], sizes = [4, 1], strides = [1, 1]} : vector<4x36xf32> to vector<4x1xf32>
    %416 = vector.extract_strided_slice %302 {offsets = [0, 0], sizes = [1, 256], strides = [1, 1]} : vector<4x256xf32> to vector<1x256xf32>
    %417 = vector.broadcast %415 : vector<4x1xf32> to vector<4x256xf32>
    %418 = vector.broadcast %416 : vector<1x256xf32> to vector<4x256xf32>
    %419 = arith.mulf %417, %418 : vector<4x256xf32>
    %420 = arith.addf %414, %419 : vector<4x256xf32>
    %421 = vector.extract_strided_slice %303 {offsets = [0, 17], sizes = [4, 1], strides = [1, 1]} : vector<4x36xf32> to vector<4x1xf32>
    %422 = vector.extract_strided_slice %302 {offsets = [1, 0], sizes = [1, 256], strides = [1, 1]} : vector<4x256xf32> to vector<1x256xf32>
    %423 = vector.broadcast %421 : vector<4x1xf32> to vector<4x256xf32>
    %424 = vector.broadcast %422 : vector<1x256xf32> to vector<4x256xf32>
    %425 = arith.mulf %423, %424 : vector<4x256xf32>
    %426 = arith.addf %420, %425 : vector<4x256xf32>
    %427 = vector.extract_strided_slice %303 {offsets = [0, 18], sizes = [4, 1], strides = [1, 1]} : vector<4x36xf32> to vector<4x1xf32>
    %428 = vector.extract_strided_slice %302 {offsets = [2, 0], sizes = [1, 256], strides = [1, 1]} : vector<4x256xf32> to vector<1x256xf32>
    %429 = vector.broadcast %427 : vector<4x1xf32> to vector<4x256xf32>
    %430 = vector.broadcast %428 : vector<1x256xf32> to vector<4x256xf32>
    %431 = arith.mulf %429, %430 : vector<4x256xf32>
    %432 = arith.addf %426, %431 : vector<4x256xf32>
    %433 = vector.extract_strided_slice %303 {offsets = [0, 19], sizes = [4, 1], strides = [1, 1]} : vector<4x36xf32> to vector<4x1xf32>
    %434 = vector.extract_strided_slice %302 {offsets = [3, 0], sizes = [1, 256], strides = [1, 1]} : vector<4x256xf32> to vector<1x256xf32>
    %435 = vector.broadcast %433 : vector<4x1xf32> to vector<4x256xf32>
    %436 = vector.broadcast %434 : vector<1x256xf32> to vector<4x256xf32>
    %437 = arith.mulf %435, %436 : vector<4x256xf32>
    %438 = arith.addf %432, %437 : vector<4x256xf32>
    %c255_i32_29 = arith.constant 255 : i32
    %439 = tpu.dynamic_rotate %302 by %c255_i32_29 dim 1 : vector<4x256xf32>, i32 -> vector<4x256xf32>
    %440 = vector.broadcast %38 : vector<1x256xf32> to vector<4x256xf32>
    %441 = arith.mulf %439, %440 : vector<4x256xf32>
    %442 = vector.extract_strided_slice %303 {offsets = [0, 20], sizes = [4, 1], strides = [1, 1]} : vector<4x36xf32> to vector<4x1xf32>
    %443 = vector.extract_strided_slice %441 {offsets = [0, 0], sizes = [1, 256], strides = [1, 1]} : vector<4x256xf32> to vector<1x256xf32>
    %444 = vector.broadcast %442 : vector<4x1xf32> to vector<4x256xf32>
    %445 = vector.broadcast %443 : vector<1x256xf32> to vector<4x256xf32>
    %446 = arith.mulf %444, %445 : vector<4x256xf32>
    %447 = arith.addf %438, %446 : vector<4x256xf32>
    %448 = vector.extract_strided_slice %303 {offsets = [0, 21], sizes = [4, 1], strides = [1, 1]} : vector<4x36xf32> to vector<4x1xf32>
    %449 = vector.extract_strided_slice %441 {offsets = [1, 0], sizes = [1, 256], strides = [1, 1]} : vector<4x256xf32> to vector<1x256xf32>
    %450 = vector.broadcast %448 : vector<4x1xf32> to vector<4x256xf32>
    %451 = vector.broadcast %449 : vector<1x256xf32> to vector<4x256xf32>
    %452 = arith.mulf %450, %451 : vector<4x256xf32>
    %453 = arith.addf %447, %452 : vector<4x256xf32>
    %454 = vector.extract_strided_slice %303 {offsets = [0, 22], sizes = [4, 1], strides = [1, 1]} : vector<4x36xf32> to vector<4x1xf32>
    %455 = vector.extract_strided_slice %441 {offsets = [2, 0], sizes = [1, 256], strides = [1, 1]} : vector<4x256xf32> to vector<1x256xf32>
    %456 = vector.broadcast %454 : vector<4x1xf32> to vector<4x256xf32>
    %457 = vector.broadcast %455 : vector<1x256xf32> to vector<4x256xf32>
    %458 = arith.mulf %456, %457 : vector<4x256xf32>
    %459 = arith.addf %453, %458 : vector<4x256xf32>
    %460 = vector.extract_strided_slice %303 {offsets = [0, 23], sizes = [4, 1], strides = [1, 1]} : vector<4x36xf32> to vector<4x1xf32>
    %461 = vector.extract_strided_slice %441 {offsets = [3, 0], sizes = [1, 256], strides = [1, 1]} : vector<4x256xf32> to vector<1x256xf32>
    %462 = vector.broadcast %460 : vector<4x1xf32> to vector<4x256xf32>
    %463 = vector.broadcast %461 : vector<1x256xf32> to vector<4x256xf32>
    %464 = arith.mulf %462, %463 : vector<4x256xf32>
    %465 = arith.addf %459, %464 : vector<4x256xf32>
    %c241_i32_30 = arith.constant 241 : i32
    %466 = tpu.dynamic_rotate %302 by %c241_i32_30 dim 1 : vector<4x256xf32>, i32 -> vector<4x256xf32>
    %467 = vector.broadcast %45 : vector<1x256xf32> to vector<4x256xf32>
    %468 = arith.mulf %466, %467 : vector<4x256xf32>
    %469 = vector.extract_strided_slice %303 {offsets = [0, 24], sizes = [4, 1], strides = [1, 1]} : vector<4x36xf32> to vector<4x1xf32>
    %470 = vector.extract_strided_slice %468 {offsets = [0, 0], sizes = [1, 256], strides = [1, 1]} : vector<4x256xf32> to vector<1x256xf32>
    %471 = vector.broadcast %469 : vector<4x1xf32> to vector<4x256xf32>
    %472 = vector.broadcast %470 : vector<1x256xf32> to vector<4x256xf32>
    %473 = arith.mulf %471, %472 : vector<4x256xf32>
    %474 = arith.addf %465, %473 : vector<4x256xf32>
    %475 = vector.extract_strided_slice %303 {offsets = [0, 25], sizes = [4, 1], strides = [1, 1]} : vector<4x36xf32> to vector<4x1xf32>
    %476 = vector.extract_strided_slice %468 {offsets = [1, 0], sizes = [1, 256], strides = [1, 1]} : vector<4x256xf32> to vector<1x256xf32>
    %477 = vector.broadcast %475 : vector<4x1xf32> to vector<4x256xf32>
    %478 = vector.broadcast %476 : vector<1x256xf32> to vector<4x256xf32>
    %479 = arith.mulf %477, %478 : vector<4x256xf32>
    %480 = arith.addf %474, %479 : vector<4x256xf32>
    %481 = vector.extract_strided_slice %303 {offsets = [0, 26], sizes = [4, 1], strides = [1, 1]} : vector<4x36xf32> to vector<4x1xf32>
    %482 = vector.extract_strided_slice %468 {offsets = [2, 0], sizes = [1, 256], strides = [1, 1]} : vector<4x256xf32> to vector<1x256xf32>
    %483 = vector.broadcast %481 : vector<4x1xf32> to vector<4x256xf32>
    %484 = vector.broadcast %482 : vector<1x256xf32> to vector<4x256xf32>
    %485 = arith.mulf %483, %484 : vector<4x256xf32>
    %486 = arith.addf %480, %485 : vector<4x256xf32>
    %487 = vector.extract_strided_slice %303 {offsets = [0, 27], sizes = [4, 1], strides = [1, 1]} : vector<4x36xf32> to vector<4x1xf32>
    %488 = vector.extract_strided_slice %468 {offsets = [3, 0], sizes = [1, 256], strides = [1, 1]} : vector<4x256xf32> to vector<1x256xf32>
    %489 = vector.broadcast %487 : vector<4x1xf32> to vector<4x256xf32>
    %490 = vector.broadcast %488 : vector<1x256xf32> to vector<4x256xf32>
    %491 = arith.mulf %489, %490 : vector<4x256xf32>
    %492 = arith.addf %486, %491 : vector<4x256xf32>
    %c240_i32_31 = arith.constant 240 : i32
    %493 = tpu.dynamic_rotate %302 by %c240_i32_31 dim 1 : vector<4x256xf32>, i32 -> vector<4x256xf32>
    %494 = vector.broadcast %49 : vector<1x256xf32> to vector<4x256xf32>
    %495 = arith.mulf %493, %494 : vector<4x256xf32>
    %496 = vector.extract_strided_slice %303 {offsets = [0, 28], sizes = [4, 1], strides = [1, 1]} : vector<4x36xf32> to vector<4x1xf32>
    %497 = vector.extract_strided_slice %495 {offsets = [0, 0], sizes = [1, 256], strides = [1, 1]} : vector<4x256xf32> to vector<1x256xf32>
    %498 = vector.broadcast %496 : vector<4x1xf32> to vector<4x256xf32>
    %499 = vector.broadcast %497 : vector<1x256xf32> to vector<4x256xf32>
    %500 = arith.mulf %498, %499 : vector<4x256xf32>
    %501 = arith.addf %492, %500 : vector<4x256xf32>
    %502 = vector.extract_strided_slice %303 {offsets = [0, 29], sizes = [4, 1], strides = [1, 1]} : vector<4x36xf32> to vector<4x1xf32>
    %503 = vector.extract_strided_slice %495 {offsets = [1, 0], sizes = [1, 256], strides = [1, 1]} : vector<4x256xf32> to vector<1x256xf32>
    %504 = vector.broadcast %502 : vector<4x1xf32> to vector<4x256xf32>
    %505 = vector.broadcast %503 : vector<1x256xf32> to vector<4x256xf32>
    %506 = arith.mulf %504, %505 : vector<4x256xf32>
    %507 = arith.addf %501, %506 : vector<4x256xf32>
    %508 = vector.extract_strided_slice %303 {offsets = [0, 30], sizes = [4, 1], strides = [1, 1]} : vector<4x36xf32> to vector<4x1xf32>
    %509 = vector.extract_strided_slice %495 {offsets = [2, 0], sizes = [1, 256], strides = [1, 1]} : vector<4x256xf32> to vector<1x256xf32>
    %510 = vector.broadcast %508 : vector<4x1xf32> to vector<4x256xf32>
    %511 = vector.broadcast %509 : vector<1x256xf32> to vector<4x256xf32>
    %512 = arith.mulf %510, %511 : vector<4x256xf32>
    %513 = arith.addf %507, %512 : vector<4x256xf32>
    %514 = vector.extract_strided_slice %303 {offsets = [0, 31], sizes = [4, 1], strides = [1, 1]} : vector<4x36xf32> to vector<4x1xf32>
    %515 = vector.extract_strided_slice %495 {offsets = [3, 0], sizes = [1, 256], strides = [1, 1]} : vector<4x256xf32> to vector<1x256xf32>
    %516 = vector.broadcast %514 : vector<4x1xf32> to vector<4x256xf32>
    %517 = vector.broadcast %515 : vector<1x256xf32> to vector<4x256xf32>
    %518 = arith.mulf %516, %517 : vector<4x256xf32>
    %519 = arith.addf %513, %518 : vector<4x256xf32>
    %c239_i32_32 = arith.constant 239 : i32
    %520 = tpu.dynamic_rotate %302 by %c239_i32_32 dim 1 : vector<4x256xf32>, i32 -> vector<4x256xf32>
    %521 = vector.broadcast %56 : vector<1x256xf32> to vector<4x256xf32>
    %522 = arith.mulf %520, %521 : vector<4x256xf32>
    %523 = vector.extract_strided_slice %303 {offsets = [0, 32], sizes = [4, 1], strides = [1, 1]} : vector<4x36xf32> to vector<4x1xf32>
    %524 = vector.extract_strided_slice %522 {offsets = [0, 0], sizes = [1, 256], strides = [1, 1]} : vector<4x256xf32> to vector<1x256xf32>
    %525 = vector.broadcast %523 : vector<4x1xf32> to vector<4x256xf32>
    %526 = vector.broadcast %524 : vector<1x256xf32> to vector<4x256xf32>
    %527 = arith.mulf %525, %526 : vector<4x256xf32>
    %528 = arith.addf %519, %527 : vector<4x256xf32>
    %529 = vector.extract_strided_slice %303 {offsets = [0, 33], sizes = [4, 1], strides = [1, 1]} : vector<4x36xf32> to vector<4x1xf32>
    %530 = vector.extract_strided_slice %522 {offsets = [1, 0], sizes = [1, 256], strides = [1, 1]} : vector<4x256xf32> to vector<1x256xf32>
    %531 = vector.broadcast %529 : vector<4x1xf32> to vector<4x256xf32>
    %532 = vector.broadcast %530 : vector<1x256xf32> to vector<4x256xf32>
    %533 = arith.mulf %531, %532 : vector<4x256xf32>
    %534 = arith.addf %528, %533 : vector<4x256xf32>
    %535 = vector.extract_strided_slice %303 {offsets = [0, 34], sizes = [4, 1], strides = [1, 1]} : vector<4x36xf32> to vector<4x1xf32>
    %536 = vector.extract_strided_slice %522 {offsets = [2, 0], sizes = [1, 256], strides = [1, 1]} : vector<4x256xf32> to vector<1x256xf32>
    %537 = vector.broadcast %535 : vector<4x1xf32> to vector<4x256xf32>
    %538 = vector.broadcast %536 : vector<1x256xf32> to vector<4x256xf32>
    %539 = arith.mulf %537, %538 : vector<4x256xf32>
    %540 = arith.addf %534, %539 : vector<4x256xf32>
    %541 = vector.extract_strided_slice %303 {offsets = [0, 35], sizes = [4, 1], strides = [1, 1]} : vector<4x36xf32> to vector<4x1xf32>
    %542 = vector.extract_strided_slice %522 {offsets = [3, 0], sizes = [1, 256], strides = [1, 1]} : vector<4x256xf32> to vector<1x256xf32>
    %543 = vector.broadcast %541 : vector<4x1xf32> to vector<4x256xf32>
    %544 = vector.broadcast %542 : vector<1x256xf32> to vector<4x256xf32>
    %545 = arith.mulf %543, %544 : vector<4x256xf32>
    %546 = arith.addf %540, %545 : vector<4x256xf32>
    %547 = arith.addf %546, %1 : vector<4x256xf32>
    %c0_33 = arith.constant 0 : index
    %c0_34 = arith.constant 0 : index
    %c0_35 = arith.constant 0 : index
    %548 = vector.load %arg6[%c0_33, %c0_34, %c0_35] : memref<1x4x256xf32, #tpu.memory_space<vmem>>, vector<1x4x256xf32>
    %549 = vector.shape_cast %548 : vector<1x4x256xf32> to vector<4x256xf32>
    %550 = vector.shape_cast %547 : vector<4x256xf32> to vector<1x4x256xf32>
    tpu.vector_store %arg6[%c0_33, %c0_34, %c0_35], %550 {strides = array<i32>} : memref<1x4x256xf32, #tpu.memory_space<vmem>>, vector<1x4x256xf32>,
    return
  }
  func.func @transform_0(%arg0: i32) -> (i32, i32, i32) {
    %c0_i32 = arith.constant 0 : i32
    %c0_i32_0 = arith.constant 0 : i32
    %c0_i32_1 = arith.constant 0 : i32
    return %arg0, %c0_i32, %c0_i32_0 : i32, i32, i32
  }
  func.func @transform_1(%arg0: i32) -> (i32, i32) {
    %c0_i32 = arith.constant 0 : i32
    %c0_i32_0 = arith.constant 0 : i32
    %c0_i32_1 = arith.constant 0 : i32
    return %c0_i32, %c0_i32_0 : i32, i32
  }
  func.func @transform_2(%arg0: i32) -> (i32, i32) {
    %c0_i32 = arith.constant 0 : i32
    %c0_i32_0 = arith.constant 0 : i32
    %c0_i32_1 = arith.constant 0 : i32
    return %c0_i32, %c0_i32_0 : i32, i32
  }
  func.func @transform_3(%arg0: i32) -> (i32, i32) {
    %c0_i32 = arith.constant 0 : i32
    %c0_i32_0 = arith.constant 0 : i32
    %c0_i32_1 = arith.constant 0 : i32
    return %c0_i32, %c0_i32_0 : i32, i32
  }
  func.func @transform_4(%arg0: i32) -> (i32, i32) {
    %c0_i32 = arith.constant 0 : i32
    %c0_i32_0 = arith.constant 0 : i32
    %c0_i32_1 = arith.constant 0 : i32
    return %c0_i32, %c0_i32_0 : i32, i32
  }
  func.func @transform_5(%arg0: i32) -> (i32, i32, i32) {
    %c0_i32 = arith.constant 0 : i32
    %c0_i32_0 = arith.constant 0 : i32
    %c0_i32_1 = arith.constant 0 : i32
    return %arg0, %c0_i32, %c0_i32_0 : i32, i32, i32
  }
}

</mosaic_0001>

<llo_original>
// kernel: tpu_custom_call.1
$region0: #{tpu_custom_call.1}
  #allocation0 [shape = 'u32[]', space=smem, size = 0x4, offset = 0x4, fixed_abs, tag = 'smem constant byte address 0x4 - core index']
  #allocation1 [shape = 'u32[144,128]{1,0:T(1,128)}', space=vmem, size = 0x12000, scoped, tag = 'internal scratch']
  %s0 = inlined_call_operand.hbm [shape: f32[2,4,256], index: 0, kind: input, shape index: {}]
  %s1 = inlined_call_operand.vmem [shape: f32[4,36], index: 1, kind: input, shape index: {}]
  %s2 = inlined_call_operand.vmem [shape: f32[4,1], index: 2, kind: input, shape index: {}]
  %s3 = inlined_call_operand.vmem [shape: f32[4,36], index: 3, kind: input, shape index: {}]
  %s4 = inlined_call_operand.vmem [shape: f32[4,1], index: 4, kind: input, shape index: {}]
  %s5 = inlined_call_operand.hbm [shape: f32[2,4,256], index: 5, kind: output, shape index: {}]
  %s6 = sld [smem:[#allocation0]]
  $region57: #{tpu_custom_call.1} parent=0
    _
  %s8 = ssub.s32 1, %s6
  %s9 = scalar_select 0, %s8, %s6
  $region1: #{tpu_custom_call.1} parent=0
    #allocation2 [shape = 'u8[8192]{0}', space=vmem, size = 0x2000, scoped, tag = 'input window, operand 0']
    #allocation3 [shape = 's32[2]{0}', space=sflag, size = 0x8, scoped, tag = 'scoped memory for tpu_custom_call.1']
    #allocation4 [shape = 's32[2]{0}', space=sflag, size = 0x8, scoped, tag = 'scoped memory for tpu_custom_call.1']
    #allocation5 [shape = 'u8[8192]{0}', space=vmem, size = 0x2000, scoped, tag = 'output window, operand 0']
    %10 = vsyncpa [#allocation3], 0
    %s11 = scalar_lea.sflag [#allocation3], 1
    %12 = vsyncpa %s11, 0
    %13 = vsyncpa [#allocation4], 0
    %s14 = scalar_lea.sflag [#allocation4], 1
    %15 = vsyncpa %s14, 0
    loop: start=0, step=1, limit=4
    $region2: #{tpu_custom_call.1} parent=1 // loop_pre_header
      _
    $region3: #{tpu_custom_call.1} parent=1 // loop_header
      %s17 = sphi 0, %s21
      %p18 = scmp.ge.s32.totalorder %s17, 4
      %s27 = sphi 0, %s29
      %s30 = sphi 0, %s27
      %s31 = sphi 0, %s30
      %s47 = sphi 0, %s31
      %s51 = sphi 0, %s51
      %s53 = sphi 0, %s51
      %s54 = sphi 0, %s53
      %s68 = sphi 0, %s54
      %s72 = sphi 0, %s72
      %s74 = sphi 0, %s72
      %s75 = sphi 0, %s74
      %s89 = sphi 0, %s75
      %s93 = sphi 0, %s93
      %s95 = sphi 0, %s93
      %s96 = sphi 0, %s95
      %s110 = sphi 0, %s96
      %s114 = sphi 0, %s114
      %s116 = sphi 0, %s114
      %s117 = sphi 0, %s116
      %s131 = sphi 0, %s117
      %s137 = sphi 0, %s139
      %s140 = sphi 0, %s137
      %s141 = sphi 0, %s140
      %s157 = sphi 0, %s141
    $region4: #{tpu_custom_call.1} parent=1 // loop_header_branch
      %20 = sbr.rel (%p18) target = $region8
    $region5: #{tpu_custom_call.1} parent=1 // loop_body
      %s22 = ssub.s32 %s17, 1
      %s23 = ssub.s32 %s17, 2
      %s24 = sadd.s32 %s17, 1
      %s25 = ssub.s32 %s17, %s24
      %p26 = scmp.eq.s32.totalorder %s25, 0
      %s28 = sadd.s32 %s27, 1
      %s29 = scalar_select %p26, %s27, %s28
      %p32 = pneg %p26
      %p33 = scmp.eq.s32.totalorder %s17, 1
      %p34 = por %p32, %p33
      %p35 = scmp.ne.s32.totalorder %s27, %s30
      %p36 = scmp.eq.s32.totalorder %s17, 0
      %p37 = por %p35, %p36
      %p38 = scmp.ne.s32.totalorder %s27, %s30
      %p39 = scmp.eq.s32.totalorder %s22, 1
      %p40 = por %p38, %p39
      %p41 = scmp.ne.s32.totalorder %s30, %s31
      %p42 = scmp.eq.s32.totalorder %s22, 0
      %p43 = por %p41, %p42
      %p44 = scmp.ne.s32.totalorder %s30, %s31
      %p45 = scmp.eq.s32.totalorder %s23, 1
      %p46 = por %p44, %p45
      %p48 = scmp.ne.s32.totalorder %s31, %s47
      %p49 = scmp.eq.s32.totalorder %s23, 0
      %p50 = por %p48, %p49
      %s52 = sadd.s32 %s51, 1
      %p55 = scmp.eq.s32.totalorder %s17, 1
      %p56 = scmp.ne.s32.totalorder %s51, %s53
      %p57 = scmp.eq.s32.totalorder %s17, 0
      %p58 = por %p56, %p57
      %p59 = scmp.ne.s32.totalorder %s51, %s53
      %p60 = scmp.eq.s32.totalorder %s22, 1
      %p61 = por %p59, %p60
      %p62 = scmp.ne.s32.totalorder %s53, %s54
      %p63 = scmp.eq.s32.totalorder %s22, 0
      %p64 = por %p62, %p63
      %p65 = scmp.ne.s32.totalorder %s53, %s54
      %p66 = scmp.eq.s32.totalorder %s23, 1
      %p67 = por %p65, %p66
      %p69 = scmp.ne.s32.totalorder %s54, %s68
      %p70 = scmp.eq.s32.totalorder %s23, 0
      %p71 = por %p69, %p70
      %s73 = sadd.s32 %s72, 1
      %p76 = scmp.eq.s32.totalorder %s17, 1
      %p77 = scmp.ne.s32.totalorder %s72, %s74
      %p78 = scmp.eq.s32.totalorder %s17, 0
      %p79 = por %p77, %p78
      %p80 = scmp.ne.s32.totalorder %s72, %s74
      %p81 = scmp.eq.s32.totalorder %s22, 1
      %p82 = por %p80, %p81
      %p83 = scmp.ne.s32.totalorder %s74, %s75
      %p84 = scmp.eq.s32.totalorder %s22, 0
      %p85 = por %p83, %p84
      %p86 = scmp.ne.s32.totalorder %s74, %s75
      %p87 = scmp.eq.s32.totalorder %s23, 1
      %p88 = por %p86, %p87
      %p90 = scmp.ne.s32.totalorder %s75, %s89
      %p91 = scmp.eq.s32.totalorder %s23, 0
      %p92 = por %p90, %p91
      %s94 = sadd.s32 %s93, 1
      %p97 = scmp.eq.s32.totalorder %s17, 1
      %p98 = scmp.ne.s32.totalorder %s93, %s95
      %p99 = scmp.eq.s32.totalorder %s17, 0
      %p100 = por %p98, %p99
      %p101 = scmp.ne.s32.totalorder %s93, %s95
      %p102 = scmp.eq.s32.totalorder %s22, 1
      %p103 = por %p101, %p102
      %p104 = scmp.ne.s32.totalorder %s95, %s96
      %p105 = scmp.eq.s32.totalorder %s22, 0
      %p106 = por %p104, %p105
      %p107 = scmp.ne.s32.totalorder %s95, %s96
      %p108 = scmp.eq.s32.totalorder %s23, 1
      %p109 = por %p107, %p108
      %p111 = scmp.ne.s32.totalorder %s96, %s110
      %p112 = scmp.eq.s32.totalorder %s23, 0
      %p113 = por %p111, %p112
      %s115 = sadd.s32 %s114, 1
      %p118 = scmp.eq.s32.totalorder %s17, 1
      %p119 = scmp.ne.s32.totalorder %s114, %s116
      %p120 = scmp.eq.s32.totalorder %s17, 0
      %p121 = por %p119, %p120
      %p122 = scmp.ne.s32.totalorder %s114, %s116
      %p123 = scmp.eq.s32.totalorder %s22, 1
      %p124 = por %p122, %p123
      %p125 = scmp.ne.s32.totalorder %s116, %s117
      %p126 = scmp.eq.s32.totalorder %s22, 0
      %p127 = por %p125, %p126
      %p128 = scmp.ne.s32.totalorder %s116, %s117
      %p129 = scmp.eq.s32.totalorder %s23, 1
      %p130 = por %p128, %p129
      %p132 = scmp.ne.s32.totalorder %s117, %s131
      %p133 = scmp.eq.s32.totalorder %s23, 0
      %p134 = por %p132, %p133
      %s135 = ssub.s32 %s17, %s24
      %p136 = scmp.eq.s32.totalorder %s135, 0
      %s138 = sadd.s32 %s137, 1
      %s139 = scalar_select %p136, %s137, %s138
      %p142 = pneg %p136
      %p143 = scmp.eq.s32.totalorder %s17, 1
      %p144 = por %p142, %p143
      %p145 = scmp.ne.s32.totalorder %s137, %s140
      %p146 = scmp.eq.s32.totalorder %s17, 0
      %p147 = por %p145, %p146
      %p148 = scmp.ne.s32.totalorder %s137, %s140
      %p149 = scmp.eq.s32.totalorder %s22, 1
      %p150 = por %p148, %p149
      %p151 = scmp.ne.s32.totalorder %s140, %s141
      %p152 = scmp.eq.s32.totalorder %s22, 0
      %p153 = por %p151, %p152
      %p154 = scmp.ne.s32.totalorder %s140, %s141
      %p155 = scmp.eq.s32.totalorder %s23, 1
      %p156 = por %p154, %p155
      %p158 = scmp.ne.s32.totalorder %s141, %s157
      %p159 = scmp.eq.s32.totalorder %s23, 0
      %p160 = por %p158, %p159
      %p161 = scmp.le.s32.totalorder 1, %s17
      %p162 = scmp.lt.s32.totalorder %s17, 3
      %p163 = pnand %p161, %p162
      %p164 = pneg %p163
      // Predicated region
      $region9: #{tpu_custom_call.1} parent=5 // pred_check
        _
      $region10: #{tpu_custom_call.1} parent=5 // pred_check_branch
        %166 = sbr.rel (%p163) target = $region12
      $region11: #{tpu_custom_call.1} parent=5 // pred_region
        %s167 = ssub.s32 %s17, 1
        // Predicated region
        $region13: #{tpu_custom_call.1} parent=11 // pred_check
          %p168 = pneg %p64
        $region14: #{tpu_custom_call.1} parent=11 // pred_check_branch
          %170 = sbr.rel (%p168) target = $region16
        $region15: #{tpu_custom_call.1} parent=11 // pred_region
          _
        $region16: #{tpu_custom_call.1} parent=11 // pred_fallthru
          _
        // Predicated region
        $region17: #{tpu_custom_call.1} parent=11 // pred_check
          %p171 = pneg %p85
        $region18: #{tpu_custom_call.1} parent=11 // pred_check_branch
          %173 = sbr.rel (%p171) target = $region20
        $region19: #{tpu_custom_call.1} parent=11 // pred_region
          _
        $region20: #{tpu_custom_call.1} parent=11 // pred_fallthru
          _
        // Predicated region
        $region21: #{tpu_custom_call.1} parent=11 // pred_check
          %p174 = pneg %p106
        $region22: #{tpu_custom_call.1} parent=11 // pred_check_branch
          %176 = sbr.rel (%p174) target = $region24
        $region23: #{tpu_custom_call.1} parent=11 // pred_region
          _
        $region24: #{tpu_custom_call.1} parent=11 // pred_fallthru
          _
        // Predicated region
        $region25: #{tpu_custom_call.1} parent=11 // pred_check
          %p177 = pneg %p127
        $region26: #{tpu_custom_call.1} parent=11 // pred_check_branch
          %179 = sbr.rel (%p177) target = $region28
        $region27: #{tpu_custom_call.1} parent=11 // pred_region
          _
        $region28: #{tpu_custom_call.1} parent=11 // pred_fallthru
          _
      $region12: #{tpu_custom_call.1} parent=5 // pred_fallthru
        _
      %p180 = scmp.lt.s32.totalorder %s17, 2
      // Predicated region
      $region29: #{tpu_custom_call.1} parent=5 // pred_check
        %p181 = pneg %p180
      $region30: #{tpu_custom_call.1} parent=5 // pred_check_branch
        %183 = sbr.rel (%p181) target = $region32
      $region31: #{tpu_custom_call.1} parent=5 // pred_region
        // Predicated region
        $region33: #{tpu_custom_call.1} parent=31 // pred_check
          %p184 = pneg %p37
        $region34: #{tpu_custom_call.1} parent=31 // pred_check_branch
          %186 = sbr.rel (%p184) target = $region36
        $region35: #{tpu_custom_call.1} parent=31 // pred_region
          %s187 = sand.u32 %s27, 1
          %s188 = scalar_lea.sflag [#allocation3], %s187
          %s189 = sand.u32 %s27, 1
          %s190 = smul.addr %s189, 8
          %s191 = scalar_lea.vmem [#allocation2], %s190
          %s193 = ssub.s32 128, 128
          %194 = vsyncadd %s188, %s193
          %s195 = smul.addr %s17, 2
          %s196 = smul.addr %s195, 64
          %s197 = scalar_lea.hbm %s0, %s196
          %s199 = sshll.u32 %s191, 4
          %s200 = int_to_ptr.vmem [resolvable:$true] %s199
          %202 = dma.hbm_to_vmem [thread:$0]  %s197, 128, %s200, %s188
        $region36: #{tpu_custom_call.1} parent=31 // pred_fallthru
          _
      $region32: #{tpu_custom_call.1} parent=5 // pred_fallthru
        _
      %p203 = scmp.le.s32.totalorder 1, %s17
      %p204 = scmp.lt.s32.totalorder %s17, 3
      %p205 = pnand %p203, %p204
      %p206 = pneg %p205
      // Predicated region
      $region37: #{tpu_custom_call.1} parent=5 // pred_check
        _
      $region38: #{tpu_custom_call.1} parent=5 // pred_check_branch
        %208 = sbr.rel (%p205) target = $region40
      $region39: #{tpu_custom_call.1} parent=5 // pred_region
        %s209 = ssub.s32 %s17, 1
        %s210 = sand.u32 %s30, 1
        %s211 = scalar_lea.sflag [#allocation3], %s210
        %s212 = sand.u32 %s30, 1
        %s213 = smul.addr %s212, 8
        %s214 = scalar_lea.vmem [#allocation2], %s213
        // Predicated region
        $region41: #{tpu_custom_call.1} parent=39 // pred_check
          %p215 = pneg %p43
        $region42: #{tpu_custom_call.1} parent=39 // pred_check_branch
          %217 = sbr.rel (%p215) target = $region44
        $region43: #{tpu_custom_call.1} parent=39 // pred_region
          %218 = dma.done %s211, 128
        $region44: #{tpu_custom_call.1} parent=39 // pred_fallthru
          _
        %s219 = sand.u32 %s30, 1
        %s220 = scalar_lea.sflag [#allocation3], %s219
        %s221 = sand.u32 %s30, 1
        %s222 = smul.addr %s221, 8
        %s223 = scalar_lea.vmem [#allocation2], %s222
        %p224 = pneg %p43
        %p225 = pneg %p40
        %p226 = pneg %p64
        %p227 = pneg %p61
        %p228 = pneg %p85
        %p229 = pneg %p82
        %p230 = pneg %p106
        %p231 = pneg %p103
        %p232 = pneg %p127
        %p233 = pneg %p124
        %p234 = pneg %p153
        %p235 = pneg %p150
        %s236 = sand.u32 %s140, 1
        %s237 = scalar_lea.sflag [#allocation4], %s236
        %s238 = sand.u32 %s140, 1
        %s239 = smul.addr %s238, 8
        %s240 = scalar_lea.vmem [#allocation5], %s239
        %v241 = vld [vmem:[%s214] sm:$0xff]
        %v242 = vlaneseq
        %v243 = vand.u32 %v242, 127
        %v244 = vadd.s32 %v243, 128
        %v245 = vcvt.s32.f32 %v243
        %v246 = vcvt.s32.f32 %v244
        %v247 = vadd.f32 %v245, 0.5
        %v248 = vadd.f32 %v246, 0.5
        %v249 = vrcp.pop 16.0
        %v250 = vmul.f32 %v247, %v249
        %v251 = vmul.f32 %v248, %v249
        %v252 = vfloor.f32 %v250
        %v253 = vfloor.f32 %v251
        %v254 = vcvt.f32.s32.to.zero.pseudo %v252
        %v255 = vcvt.f32.s32.to.zero.pseudo %v253
        %v256 = vmul.u32 %v254, 16
        %v257 = vmul.u32 %v255, 16
        %v258 = vsub.s32 %v243, %v256
        %v259 = vsub.s32 %v244, %v257
        %vm260 = vcmp.ge.s32.totalorder %v254, 1
        %vm261 = vcmp.ge.s32.totalorder %v255, 1
        %vm262 = vcmp.ge.s32.totalorder %v258, 1
        %vm263 = vcmp.ge.s32.totalorder %v259, 1
        %vm264 = vmand %vm260, %vm262
        %vm265 = vmand %vm261, %vm263
        %v266 = vsel %vm264, 1, 0
        %v267 = vsel %vm265, 1, 0
        %v268 = vcvt.s32.f32 %v266
        %v269 = vcvt.s32.f32 %v267
        %v270 = vsel %vm260, 1, 0
        %v271 = vsel %vm261, 1, 0
        %v272 = vcvt.s32.f32 %v270
        %v273 = vcvt.s32.f32 %v271
        %vm274 = vcmp.lt.s32.totalorder %v258, 15
        %vm275 = vcmp.lt.s32.totalorder %v259, 15
        %vm276 = vmand %vm260, %vm274
        %vm277 = vmand %vm261, %vm275
        %v278 = vsel %vm276, 1, 0
        %v279 = vsel %vm277, 1, 0
        %v280 = vcvt.s32.f32 %v278
        %v281 = vcvt.s32.f32 %v279
        %v282 = vsel %vm262, 1, 0
        %v283 = vsel %vm263, 1, 0
        %v284 = vcvt.s32.f32 %v282
        %v285 = vcvt.s32.f32 %v283
        %v286 = vsel %vm274, 1, 0
        %v287 = vsel %vm275, 1, 0
        %v288 = vcvt.s32.f32 %v286
        %v289 = vcvt.s32.f32 %v287
        %vm290 = vcmp.lt.s32.totalorder %v254, 15
        %vm291 = vcmp.lt.s32.totalorder %v255, 15
        %vm292 = vmand %vm290, %vm262
        %vm293 = vmand %vm291, %vm263
        %v294 = vsel %vm292, 1, 0
        %v295 = vsel %vm293, 1, 0
        %v296 = vcvt.s32.f32 %v294
        %v297 = vcvt.s32.f32 %v295
        %v298 = vsel %vm290, 1, 0
        %v299 = vsel %vm291, 1, 0
        %v300 = vcvt.s32.f32 %v298
        %v301 = vcvt.s32.f32 %v299
        %vm302 = vmand %vm290, %vm274
        %vm303 = vmand %vm291, %vm275
        %v304 = vsel %vm302, 1, 0
        %v305 = vsel %vm303, 1, 0
        %v306 = vcvt.s32.f32 %v304
        %v307 = vcvt.s32.f32 %v305
        %v308 = vld [vmem:[%s1] sm:$0xf]
        %v309 = vld [vmem:[%s2] sm:$0xf]
        %311 = vset.pattern.permute.xlu0 0
        %312 = vperm.xlu0 %311, %v309
        %v313 = vpop.permute.xlu0 %312
        %v316 = vcombine.high %v241, %v241
        %318 = vrot.lane.b32.xlu0 %v241, 17
        %v319 = vpop.permute.xlu0 %318
        %320 = vrot.lane.b32.xlu0 %v316, 17
        %v321 = vpop.permute.xlu0 %320
        %vm322 = vcmp.lt.s32.totalorder %v243, 17
        %v323 = vsel %vm322, %v319, %v321
        %v324 = vsel %vm322, %v321, %v319
        %v325 = vmul.f32 %v324, %v268
        %v326 = vmul.f32 %v323, %v269
        %328 = vset.pattern.permute.xlu0 0
        %329 = vperm.xlu0 %328, %v308
        %v330 = vpop.permute.xlu0 %329
        %v332 = vlaneseq
        %v333 = vshrl.u32 %v332, 7
        %v334 = vsub.s32 0, %v333
        %v335 = vrot.slane %v325, %v334
        %v336 = vlaneseq
        %v337 = vshrl.u32 %v336, 7
        %v338 = vsub.s32 0, %v337
        %v339 = vrot.slane %v326, %v338
        %v340 = vmul.f32 %v330, %v335
        %v341 = vmul.f32 %v330, %v339
        %v342 = vadd.f32 %v313, %v340
        %v343 = vadd.f32 %v313, %v341
        %344 = vset.pattern.permute.xlu0 1
        %345 = vperm.xlu0 %344, %v308
        %v346 = vpop.permute.xlu0 %345
        %v348 = vlaneseq
        %v349 = vshrl.u32 %v348, 7
        %v350 = vsub.s32 1, %v349
        %v351 = vrot.slane %v325, %v350
        %v352 = vlaneseq
        %v353 = vshrl.u32 %v352, 7
        %v354 = vsub.s32 1, %v353
        %v355 = vrot.slane %v326, %v354
        %v356 = vmul.f32 %v346, %v351
        %v357 = vmul.f32 %v346, %v355
        %v358 = vadd.f32 %v342, %v356
        %v359 = vadd.f32 %v343, %v357
        %360 = vset.pattern.permute.xlu0 2
        %361 = vperm.xlu0 %360, %v308
        %v362 = vpop.permute.xlu0 %361
        %v364 = vlaneseq
        %v365 = vshrl.u32 %v364, 7
        %v366 = vsub.s32 2, %v365
        %v367 = vrot.slane %v325, %v366
        %v368 = vlaneseq
        %v369 = vshrl.u32 %v368, 7
        %v370 = vsub.s32 2, %v369
        %v371 = vrot.slane %v326, %v370
        %v372 = vmul.f32 %v362, %v367
        %v373 = vmul.f32 %v362, %v371
        %v374 = vadd.f32 %v358, %v372
        %v375 = vadd.f32 %v359, %v373
        %376 = vset.pattern.permute.xlu0 3
        %377 = vperm.xlu0 %376, %v308
        %v378 = vpop.permute.xlu0 %377
        %v380 = vlaneseq
        %v381 = vshrl.u32 %v380, 7
        %v382 = vsub.s32 3, %v381
        %v383 = vrot.slane %v325, %v382
        %v384 = vlaneseq
        %v385 = vshrl.u32 %v384, 7
        %v386 = vsub.s32 3, %v385
        %v387 = vrot.slane %v326, %v386
        %v388 = vmul.f32 %v378, %v383
        %v389 = vmul.f32 %v378, %v387
        %v390 = vadd.f32 %v374, %v388
        %v391 = vadd.f32 %v375, %v389
        %392 = vrot.lane.b32.xlu0 %v241, 16
        %v393 = vpop.permute.xlu0 %392
        %394 = vrot.lane.b32.xlu0 %v316, 16
        %v395 = vpop.permute.xlu0 %394
        %vm396 = vcmp.lt.s32.totalorder %v243, 16
        %v397 = vsel %vm396, %v393, %v395
        %v398 = vsel %vm396, %v395, %v393
        %v399 = vmul.f32 %v398, %v272
        %v400 = vmul.f32 %v397, %v273
        %401 = vset.pattern.permute.xlu0 4
        %402 = vperm.xlu0 %401, %v308
        %v403 = vpop.permute.xlu0 %402
        %v405 = vlaneseq
        %v406 = vshrl.u32 %v405, 7
        %v407 = vsub.s32 0, %v406
        %v408 = vrot.slane %v399, %v407
        %v409 = vlaneseq
        %v410 = vshrl.u32 %v409, 7
        %v411 = vsub.s32 0, %v410
        %v412 = vrot.slane %v400, %v411
        %v413 = vmul.f32 %v403, %v408
        %v414 = vmul.f32 %v403, %v412
        %v415 = vadd.f32 %v390, %v413
        %v416 = vadd.f32 %v391, %v414
        %417 = vset.pattern.permute.xlu0 5
        %418 = vperm.xlu0 %417, %v308
        %v419 = vpop.permute.xlu0 %418
        %v421 = vlaneseq
        %v422 = vshrl.u32 %v421, 7
        %v423 = vsub.s32 1, %v422
        %v424 = vrot.slane %v399, %v423
        %v425 = vlaneseq
        %v426 = vshrl.u32 %v425, 7
        %v427 = vsub.s32 1, %v426
        %v428 = vrot.slane %v400, %v427
        %v429 = vmul.f32 %v419, %v424
        %v430 = vmul.f32 %v419, %v428
        %v431 = vadd.f32 %v415, %v429
        %v432 = vadd.f32 %v416, %v430
        %433 = vset.pattern.permute.xlu0 6
        %434 = vperm.xlu0 %433, %v308
        %v435 = vpop.permute.xlu0 %434
        %v437 = vlaneseq
        %v438 = vshrl.u32 %v437, 7
        %v439 = vsub.s32 2, %v438
        %v440 = vrot.slane %v399, %v439
        %v441 = vlaneseq
        %v442 = vshrl.u32 %v441, 7
        %v443 = vsub.s32 2, %v442
        %v444 = vrot.slane %v400, %v443
        %v445 = vmul.f32 %v435, %v440
        %v446 = vmul.f32 %v435, %v444
        %v447 = vadd.f32 %v431, %v445
        %v448 = vadd.f32 %v432, %v446
        %449 = vset.pattern.permute.xlu0 7
        %450 = vperm.xlu0 %449, %v308
        %v451 = vpop.permute.xlu0 %450
        %v453 = vlaneseq
        %v454 = vshrl.u32 %v453, 7
        %v455 = vsub.s32 3, %v454
        %v456 = vrot.slane %v399, %v455
        %v457 = vlaneseq
        %v458 = vshrl.u32 %v457, 7
        %v459 = vsub.s32 3, %v458
        %v460 = vrot.slane %v400, %v459
        %v461 = vmul.f32 %v451, %v456
        %v462 = vmul.f32 %v451, %v460
        %v463 = vadd.f32 %v447, %v461
        %v464 = vadd.f32 %v448, %v462
        %465 = vrot.lane.b32.xlu0 %v241, 15
        %v466 = vpop.permute.xlu0 %465
        %467 = vrot.lane.b32.xlu0 %v316, 15
        %v468 = vpop.permute.xlu0 %467
        %vm469 = vcmp.lt.s32.totalorder %v243, 15
        %v470 = vsel %vm469, %v466, %v468
        %v471 = vsel %vm469, %v468, %v466
        %v472 = vmul.f32 %v471, %v280
        %v473 = vmul.f32 %v470, %v281
        %474 = vset.pattern.permute.xlu0 8
        %475 = vperm.xlu0 %474, %v308
        %v476 = vpop.permute.xlu0 %475
        %v478 = vlaneseq
        %v479 = vshrl.u32 %v478, 7
        %v480 = vsub.s32 0, %v479
        %v481 = vrot.slane %v472, %v480
        %v482 = vlaneseq
        %v483 = vshrl.u32 %v482, 7
        %v484 = vsub.s32 0, %v483
        %v485 = vrot.slane %v473, %v484
        %v486 = vmul.f32 %v476, %v481
        %v487 = vmul.f32 %v476, %v485
        %v488 = vadd.f32 %v463, %v486
        %v489 = vadd.f32 %v464, %v487
        %490 = vset.pattern.permute.xlu0 9
        %491 = vperm.xlu0 %490, %v308
        %v492 = vpop.permute.xlu0 %491
        %v494 = vlaneseq
        %v495 = vshrl.u32 %v494, 7
        %v496 = vsub.s32 1, %v495
        %v497 = vrot.slane %v472, %v496
        %v498 = vlaneseq
        %v499 = vshrl.u32 %v498, 7
        %v500 = vsub.s32 1, %v499
        %v501 = vrot.slane %v473, %v500
        %v502 = vmul.f32 %v492, %v497
        %v503 = vmul.f32 %v492, %v501
        %v504 = vadd.f32 %v488, %v502
        %v505 = vadd.f32 %v489, %v503
        %506 = vset.pattern.permute.xlu0 10
        %507 = vperm.xlu0 %506, %v308
        %v508 = vpop.permute.xlu0 %507
        %v510 = vlaneseq
        %v511 = vshrl.u32 %v510, 7
        %v512 = vsub.s32 2, %v511
        %v513 = vrot.slane %v472, %v512
        %v514 = vlaneseq
        %v515 = vshrl.u32 %v514, 7
        %v516 = vsub.s32 2, %v515
        %v517 = vrot.slane %v473, %v516
        %v518 = vmul.f32 %v508, %v513
        %v519 = vmul.f32 %v508, %v517
        %v520 = vadd.f32 %v504, %v518
        %v521 = vadd.f32 %v505, %v519
        %522 = vset.pattern.permute.xlu0 11
        %523 = vperm.xlu0 %522, %v308
        %v524 = vpop.permute.xlu0 %523
        %v526 = vlaneseq
        %v527 = vshrl.u32 %v526, 7
        %v528 = vsub.s32 3, %v527
        %v529 = vrot.slane %v472, %v528
        %v530 = vlaneseq
        %v531 = vshrl.u32 %v530, 7
        %v532 = vsub.s32 3, %v531
        %v533 = vrot.slane %v473, %v532
        %v534 = vmul.f32 %v524, %v529
        %v535 = vmul.f32 %v524, %v533
        %v536 = vadd.f32 %v520, %v534
        %v537 = vadd.f32 %v521, %v535
        %538 = vrot.lane.b32.xlu0 %v241, 1
        %v539 = vpop.permute.xlu0 %538
        %540 = vrot.lane.b32.xlu0 %v316, 1
        %v541 = vpop.permute.xlu0 %540
        %vm542 = vcmp.lt.s32.totalorder %v243, 1
        %v543 = vsel %vm542, %v539, %v541
        %v544 = vsel %vm542, %v541, %v539
        %v545 = vmul.f32 %v544, %v284
        %v546 = vmul.f32 %v543, %v285
        %547 = vset.pattern.permute.xlu0 12
        %548 = vperm.xlu0 %547, %v308
        %v549 = vpop.permute.xlu0 %548
        %v551 = vlaneseq
        %v552 = vshrl.u32 %v551, 7
        %v553 = vsub.s32 0, %v552
        %v554 = vrot.slane %v545, %v553
        %v555 = vlaneseq
        %v556 = vshrl.u32 %v555, 7
        %v557 = vsub.s32 0, %v556
        %v558 = vrot.slane %v546, %v557
        %v559 = vmul.f32 %v549, %v554
        %v560 = vmul.f32 %v549, %v558
        %v561 = vadd.f32 %v536, %v559
        %v562 = vadd.f32 %v537, %v560
        %563 = vset.pattern.permute.xlu0 13
        %564 = vperm.xlu0 %563, %v308
        %v565 = vpop.permute.xlu0 %564
        %v567 = vlaneseq
        %v568 = vshrl.u32 %v567, 7
        %v569 = vsub.s32 1, %v568
        %v570 = vrot.slane %v545, %v569
        %v571 = vlaneseq
        %v572 = vshrl.u32 %v571, 7
        %v573 = vsub.s32 1, %v572
        %v574 = vrot.slane %v546, %v573
        %v575 = vmul.f32 %v565, %v570
        %v576 = vmul.f32 %v565, %v574
        %v577 = vadd.f32 %v561, %v575
        %v578 = vadd.f32 %v562, %v576
        %579 = vset.pattern.permute.xlu0 14
        %580 = vperm.xlu0 %579, %v308
        %v581 = vpop.permute.xlu0 %580
        %v583 = vlaneseq
        %v584 = vshrl.u32 %v583, 7
        %v585 = vsub.s32 2, %v584
        %v586 = vrot.slane %v545, %v585
        %v587 = vlaneseq
        %v588 = vshrl.u32 %v587, 7
        %v589 = vsub.s32 2, %v588
        %v590 = vrot.slane %v546, %v589
        %v591 = vmul.f32 %v581, %v586
        %v592 = vmul.f32 %v581, %v590
        %v593 = vadd.f32 %v577, %v591
        %v594 = vadd.f32 %v578, %v592
        %595 = vset.pattern.permute.xlu0 15
        %596 = vperm.xlu0 %595, %v308
        %v597 = vpop.permute.xlu0 %596
        %v599 = vlaneseq
        %v600 = vshrl.u32 %v599, 7
        %v601 = vsub.s32 3, %v600
        %v602 = vrot.slane %v545, %v601
        %v603 = vlaneseq
        %v604 = vshrl.u32 %v603, 7
        %v605 = vsub.s32 3, %v604
        %v606 = vrot.slane %v546, %v605
        %v607 = vmul.f32 %v597, %v602
        %v608 = vmul.f32 %v597, %v606
        %v609 = vadd.f32 %v593, %v607
        %v610 = vadd.f32 %v594, %v608
        %611 = vset.pattern.permute.xlu0 16
        %612 = vperm.xlu0 %611, %v308
        %v613 = vpop.permute.xlu0 %612
        %v615 = vlaneseq
        %v616 = vshrl.u32 %v615, 7
        %v617 = vsub.s32 0, %v616
        %v618 = vrot.slane %v241, %v617
        %v619 = vlaneseq
        %v620 = vshrl.u32 %v619, 7
        %v621 = vsub.s32 4, %v620
        %v622 = vrot.slane %v241, %v621
        %v625 = vlaneseq
        %v626 = vshrl.u32 %v625, 7
        %v627 = vsub.s32 0, %v626
        %v628 = vrot.slane %v618, %v627
        %v629 = vlaneseq
        %v630 = vshrl.u32 %v629, 7
        %v631 = vsub.s32 0, %v630
        %v632 = vrot.slane %v622, %v631
        %v633 = vmul.f32 %v613, %v628
        %v634 = vmul.f32 %v613, %v632
        %v635 = vadd.f32 %v609, %v633
        %v636 = vadd.f32 %v610, %v634
        %637 = vset.pattern.permute.xlu0 17
        %638 = vperm.xlu0 %637, %v308
        %v639 = vpop.permute.xlu0 %638
        %v641 = vlaneseq
        %v642 = vshrl.u32 %v641, 7
        %v643 = vsub.s32 1, %v642
        %v644 = vrot.slane %v241, %v643
        %v645 = vlaneseq
        %v646 = vshrl.u32 %v645, 7
        %v647 = vsub.s32 5, %v646
        %v648 = vrot.slane %v241, %v647
        %v651 = vlaneseq
        %v652 = vshrl.u32 %v651, 7
        %v653 = vsub.s32 1, %v652
        %v654 = vrot.slane %v644, %v653
        %v655 = vlaneseq
        %v656 = vshrl.u32 %v655, 7
        %v657 = vsub.s32 1, %v656
        %v658 = vrot.slane %v648, %v657
        %v659 = vmul.f32 %v639, %v654
        %v660 = vmul.f32 %v639, %v658
        %v661 = vadd.f32 %v635, %v659
        %v662 = vadd.f32 %v636, %v660
        %663 = vset.pattern.permute.xlu0 18
        %664 = vperm.xlu0 %663, %v308
        %v665 = vpop.permute.xlu0 %664
        %v667 = vlaneseq
        %v668 = vshrl.u32 %v667, 7
        %v669 = vsub.s32 2, %v668
        %v670 = vrot.slane %v241, %v669
        %v671 = vlaneseq
        %v672 = vshrl.u32 %v671, 7
        %v673 = vsub.s32 6, %v672
        %v674 = vrot.slane %v241, %v673
        %v677 = vlaneseq
        %v678 = vshrl.u32 %v677, 7
        %v679 = vsub.s32 2, %v678
        %v680 = vrot.slane %v670, %v679
        %v681 = vlaneseq
        %v682 = vshrl.u32 %v681, 7
        %v683 = vsub.s32 2, %v682
        %v684 = vrot.slane %v674, %v683
        %v685 = vmul.f32 %v665, %v680
        %v686 = vmul.f32 %v665, %v684
        %v687 = vadd.f32 %v661, %v685
        %v688 = vadd.f32 %v662, %v686
        %689 = vset.pattern.permute.xlu0 19
        %690 = vperm.xlu0 %689, %v308
        %v691 = vpop.permute.xlu0 %690
        %v693 = vlaneseq
        %v694 = vshrl.u32 %v693, 7
        %v695 = vsub.s32 3, %v694
        %v696 = vrot.slane %v241, %v695
        %v697 = vlaneseq
        %v698 = vshrl.u32 %v697, 7
        %v699 = vsub.s32 7, %v698
        %v700 = vrot.slane %v241, %v699
        %v703 = vlaneseq
        %v704 = vshrl.u32 %v703, 7
        %v705 = vsub.s32 3, %v704
        %v706 = vrot.slane %v696, %v705
        %v707 = vlaneseq
        %v708 = vshrl.u32 %v707, 7
        %v709 = vsub.s32 3, %v708
        %v710 = vrot.slane %v700, %v709
        %v711 = vmul.f32 %v691, %v706
        %v712 = vmul.f32 %v691, %v710
        %v713 = vadd.f32 %v687, %v711
        %v714 = vadd.f32 %v688, %v712
        %715 = vrot.lane.b32.xlu0 %v241, 127
        %v716 = vpop.permute.xlu0 %715
        %717 = vrot.lane.b32.xlu0 %v316, 127
        %v718 = vpop.permute.xlu0 %717
        %vm719 = vcmp.lt.s32.totalorder %v243, 127
        %v720 = vsel %vm719, %v716, %v718
        %v721 = vsel %vm719, %v718, %v716
        %v722 = vmul.f32 %v720, %v288
        %v723 = vmul.f32 %v721, %v289
        %724 = vset.pattern.permute.xlu0 20
        %725 = vperm.xlu0 %724, %v308
        %v726 = vpop.permute.xlu0 %725
        %v728 = vlaneseq
        %v729 = vshrl.u32 %v728, 7
        %v730 = vsub.s32 0, %v729
        %v731 = vrot.slane %v722, %v730
        %v732 = vlaneseq
        %v733 = vshrl.u32 %v732, 7
        %v734 = vsub.s32 0, %v733
        %v735 = vrot.slane %v723, %v734
        %v736 = vmul.f32 %v726, %v731
        %v737 = vmul.f32 %v726, %v735
        %v738 = vadd.f32 %v713, %v736
        %v739 = vadd.f32 %v714, %v737
        %740 = vset.pattern.permute.xlu0 21
        %741 = vperm.xlu0 %740, %v308
        %v742 = vpop.permute.xlu0 %741
        %v744 = vlaneseq
        %v745 = vshrl.u32 %v744, 7
        %v746 = vsub.s32 1, %v745
        %v747 = vrot.slane %v722, %v746
        %v748 = vlaneseq
        %v749 = vshrl.u32 %v748, 7
        %v750 = vsub.s32 1, %v749
        %v751 = vrot.slane %v723, %v750
        %v752 = vmul.f32 %v742, %v747
        %v753 = vmul.f32 %v742, %v751
        %v754 = vadd.f32 %v738, %v752
        %v755 = vadd.f32 %v739, %v753
        %756 = vset.pattern.permute.xlu0 22
        %757 = vperm.xlu0 %756, %v308
        %v758 = vpop.permute.xlu0 %757
        %v760 = vlaneseq
        %v761 = vshrl.u32 %v760, 7
        %v762 = vsub.s32 2, %v761
        %v763 = vrot.slane %v722, %v762
        %v764 = vlaneseq
        %v765 = vshrl.u32 %v764, 7
        %v766 = vsub.s32 2, %v765
        %v767 = vrot.slane %v723, %v766
        %v768 = vmul.f32 %v758, %v763
        %v769 = vmul.f32 %v758, %v767
        %v770 = vadd.f32 %v754, %v768
        %v771 = vadd.f32 %v755, %v769
        %772 = vset.pattern.permute.xlu0 23
        %773 = vperm.xlu0 %772, %v308
        %v774 = vpop.permute.xlu0 %773
        %v776 = vlaneseq
        %v777 = vshrl.u32 %v776, 7
        %v778 = vsub.s32 3, %v777
        %v779 = vrot.slane %v722, %v778
        %v780 = vlaneseq
        %v781 = vshrl.u32 %v780, 7
        %v782 = vsub.s32 3, %v781
        %v783 = vrot.slane %v723, %v782
        %v784 = vmul.f32 %v774, %v779
        %v785 = vmul.f32 %v774, %v783
        %v786 = vadd.f32 %v770, %v784
        %v787 = vadd.f32 %v771, %v785
        %788 = vrot.lane.b32.xlu0 %v241, 113
        %v789 = vpop.permute.xlu0 %788
        %790 = vrot.lane.b32.xlu0 %v316, 113
        %v791 = vpop.permute.xlu0 %790
        %vm792 = vcmp.lt.s32.totalorder %v243, 113
        %v793 = vsel %vm792, %v789, %v791
        %v794 = vsel %vm792, %v791, %v789
        %v795 = vmul.f32 %v793, %v296
        %v796 = vmul.f32 %v794, %v297
        %797 = vset.pattern.permute.xlu0 24
        %798 = vperm.xlu0 %797, %v308
        %v799 = vpop.permute.xlu0 %798
        %v801 = vlaneseq
        %v802 = vshrl.u32 %v801, 7
        %v803 = vsub.s32 0, %v802
        %v804 = vrot.slane %v795, %v803
        %v805 = vlaneseq
        %v806 = vshrl.u32 %v805, 7
        %v807 = vsub.s32 0, %v806
        %v808 = vrot.slane %v796, %v807
        %v809 = vmul.f32 %v799, %v804
        %v810 = vmul.f32 %v799, %v808
        %v811 = vadd.f32 %v786, %v809
        %v812 = vadd.f32 %v787, %v810
        %813 = vset.pattern.permute.xlu0 25
        %814 = vperm.xlu0 %813, %v308
        %v815 = vpop.permute.xlu0 %814
        %v817 = vlaneseq
        %v818 = vshrl.u32 %v817, 7
        %v819 = vsub.s32 1, %v818
        %v820 = vrot.slane %v795, %v819
        %v821 = vlaneseq
        %v822 = vshrl.u32 %v821, 7
        %v823 = vsub.s32 1, %v822
        %v824 = vrot.slane %v796, %v823
        %v825 = vmul.f32 %v815, %v820
        %v826 = vmul.f32 %v815, %v824
        %v827 = vadd.f32 %v811, %v825
        %v828 = vadd.f32 %v812, %v826
        %829 = vset.pattern.permute.xlu0 26
        %830 = vperm.xlu0 %829, %v308
        %v831 = vpop.permute.xlu0 %830
        %v833 = vlaneseq
        %v834 = vshrl.u32 %v833, 7
        %v835 = vsub.s32 2, %v834
        %v836 = vrot.slane %v795, %v835
        %v837 = vlaneseq
        %v838 = vshrl.u32 %v837, 7
        %v839 = vsub.s32 2, %v838
        %v840 = vrot.slane %v796, %v839
        %v841 = vmul.f32 %v831, %v836
        %v842 = vmul.f32 %v831, %v840
        %v843 = vadd.f32 %v827, %v841
        %v844 = vadd.f32 %v828, %v842
        %845 = vset.pattern.permute.xlu0 27
        %846 = vperm.xlu0 %845, %v308
        %v847 = vpop.permute.xlu0 %846
        %v849 = vlaneseq
        %v850 = vshrl.u32 %v849, 7
        %v851 = vsub.s32 3, %v850
        %v852 = vrot.slane %v795, %v851
        %v853 = vlaneseq
        %v854 = vshrl.u32 %v853, 7
        %v855 = vsub.s32 3, %v854
        %v856 = vrot.slane %v796, %v855
        %v857 = vmul.f32 %v847, %v852
        %v858 = vmul.f32 %v847, %v856
        %v859 = vadd.f32 %v843, %v857
        %v860 = vadd.f32 %v844, %v858
        %861 = vrot.lane.b32.xlu0 %v241, 112
        %v862 = vpop.permute.xlu0 %861
        %863 = vrot.lane.b32.xlu0 %v316, 112
        %v864 = vpop.permute.xlu0 %863
        %vm865 = vcmp.lt.s32.totalorder %v243, 112
        %v866 = vsel %vm865, %v862, %v864
        %v867 = vsel %vm865, %v864, %v862
        %v868 = vmul.f32 %v866, %v300
        %v869 = vmul.f32 %v867, %v301
        %870 = vset.pattern.permute.xlu0 28
        %871 = vperm.xlu0 %870, %v308
        %v872 = vpop.permute.xlu0 %871
        %v874 = vlaneseq
        %v875 = vshrl.u32 %v874, 7
        %v876 = vsub.s32 0, %v875
        %v877 = vrot.slane %v868, %v876
        %v878 = vlaneseq
        %v879 = vshrl.u32 %v878, 7
        %v880 = vsub.s32 0, %v879
        %v881 = vrot.slane %v869, %v880
        %v882 = vmul.f32 %v872, %v877
        %v883 = vmul.f32 %v872, %v881
        %v884 = vadd.f32 %v859, %v882
        %v885 = vadd.f32 %v860, %v883
        %886 = vset.pattern.permute.xlu0 29
        %887 = vperm.xlu0 %886, %v308
        %v888 = vpop.permute.xlu0 %887
        %v890 = vlaneseq
        %v891 = vshrl.u32 %v890, 7
        %v892 = vsub.s32 1, %v891
        %v893 = vrot.slane %v868, %v892
        %v894 = vlaneseq
        %v895 = vshrl.u32 %v894, 7
        %v896 = vsub.s32 1, %v895
        %v897 = vrot.slane %v869, %v896
        %v898 = vmul.f32 %v888, %v893
        %v899 = vmul.f32 %v888, %v897
        %v900 = vadd.f32 %v884, %v898
        %v901 = vadd.f32 %v885, %v899
        %902 = vset.pattern.permute.xlu0 30
        %903 = vperm.xlu0 %902, %v308
        %v904 = vpop.permute.xlu0 %903
        %v906 = vlaneseq
        %v907 = vshrl.u32 %v906, 7
        %v908 = vsub.s32 2, %v907
        %v909 = vrot.slane %v868, %v908
        %v910 = vlaneseq
        %v911 = vshrl.u32 %v910, 7
        %v912 = vsub.s32 2, %v911
        %v913 = vrot.slane %v869, %v912
        %v914 = vmul.f32 %v904, %v909
        %v915 = vmul.f32 %v904, %v913
        %v916 = vadd.f32 %v900, %v914
        %v917 = vadd.f32 %v901, %v915
        %918 = vset.pattern.permute.xlu0 31
        %919 = vperm.xlu0 %918, %v308
        %v920 = vpop.permute.xlu0 %919
        %v922 = vlaneseq
        %v923 = vshrl.u32 %v922, 7
        %v924 = vsub.s32 3, %v923
        %v925 = vrot.slane %v868, %v924
        %v926 = vlaneseq
        %v927 = vshrl.u32 %v926, 7
        %v928 = vsub.s32 3, %v927
        %v929 = vrot.slane %v869, %v928
        %v930 = vmul.f32 %v920, %v925
        %v931 = vmul.f32 %v920, %v929
        %v932 = vadd.f32 %v916, %v930
        %v933 = vadd.f32 %v917, %v931
        %934 = vrot.lane.b32.xlu0 %v241, 111
        %v935 = vpop.permute.xlu0 %934
        %936 = vrot.lane.b32.xlu0 %v316, 111
        %v937 = vpop.permute.xlu0 %936
        %vm938 = vcmp.lt.s32.totalorder %v243, 111
        %v939 = vsel %vm938, %v935, %v937
        %v940 = vsel %vm938, %v937, %v935
        %v941 = vmul.f32 %v939, %v306
        %v942 = vmul.f32 %v940, %v307
        %943 = vset.pattern.permute.xlu0 32
        %944 = vperm.xlu0 %943, %v308
        %v945 = vpop.permute.xlu0 %944
        %v947 = vlaneseq
        %v948 = vshrl.u32 %v947, 7
        %v949 = vsub.s32 0, %v948
        %v950 = vrot.slane %v941, %v949
        %v951 = vlaneseq
        %v952 = vshrl.u32 %v951, 7
        %v953 = vsub.s32 0, %v952
        %v954 = vrot.slane %v942, %v953
        %v955 = vmul.f32 %v945, %v950
        %v956 = vmul.f32 %v945, %v954
        %v957 = vadd.f32 %v932, %v955
        %v958 = vadd.f32 %v933, %v956
        %959 = vset.pattern.permute.xlu0 33
        %960 = vperm.xlu0 %959, %v308
        %v961 = vpop.permute.xlu0 %960
        %v963 = vlaneseq
        %v964 = vshrl.u32 %v963, 7
        %v965 = vsub.s32 1, %v964
        %v966 = vrot.slane %v941, %v965
        %v967 = vlaneseq
        %v968 = vshrl.u32 %v967, 7
        %v969 = vsub.s32 1, %v968
        %v970 = vrot.slane %v942, %v969
        %v971 = vmul.f32 %v961, %v966
        %v972 = vmul.f32 %v961, %v970
        %v973 = vadd.f32 %v957, %v971
        %v974 = vadd.f32 %v958, %v972
        %975 = vset.pattern.permute.xlu0 34
        %976 = vperm.xlu0 %975, %v308
        %v977 = vpop.permute.xlu0 %976
        %v979 = vlaneseq
        %v980 = vshrl.u32 %v979, 7
        %v981 = vsub.s32 2, %v980
        %v982 = vrot.slane %v941, %v981
        %v983 = vlaneseq
        %v984 = vshrl.u32 %v983, 7
        %v985 = vsub.s32 2, %v984
        %v986 = vrot.slane %v942, %v985
        %v987 = vmul.f32 %v977, %v982
        %v988 = vmul.f32 %v977, %v986
        %v989 = vadd.f32 %v973, %v987
        %v990 = vadd.f32 %v974, %v988
        %991 = vset.pattern.permute.xlu0 35
        %992 = vperm.xlu0 %991, %v308
        %v993 = vpop.permute.xlu0 %992
        %v995 = vlaneseq
        %v996 = vshrl.u32 %v995, 7
        %v997 = vsub.s32 3, %v996
        %v998 = vrot.slane %v941, %v997
        %v999 = vlaneseq
        %v1000 = vshrl.u32 %v999, 7
        %v1001 = vsub.s32 3, %v1000
        %v1002 = vrot.slane %v942, %v1001
        %v1003 = vmul.f32 %v993, %v998
        %v1004 = vmul.f32 %v993, %v1002
        %v1005 = vadd.f32 %v989, %v1003
        %v1006 = vadd.f32 %v990, %v1004
        %v1007 = vmax.f32 %v1005, 0.0
        %v1008 = vmax.f32 %v1006, 0.0
        %v1009 = vld [vmem:[%s3] sm:$0xf]
        %v1010 = vld [vmem:[%s4] sm:$0xf]
        %1012 = vset.pattern.permute.xlu0 0
        %1013 = vperm.xlu0 %1012, %v1010
        %v1014 = vpop.permute.xlu0 %1013
        %1016 = vrot.lane.b32.xlu0 %v1007, 17
        %v1017 = vpop.permute.xlu0 %1016
        %1018 = vrot.lane.b32.xlu0 %v1008, 17
        %v1019 = vpop.permute.xlu0 %1018
        %v1020 = vsel %vm322, %v1017, %v1019
        %v1021 = vsel %vm322, %v1019, %v1017
        %v1022 = vmul.f32 %v1021, %v268
        %v1023 = vmul.f32 %v1020, %v269
        %1025 = vset.pattern.permute.xlu0 0
        %1026 = vperm.xlu0 %1025, %v1009
        %v1027 = vpop.permute.xlu0 %1026
        %v1029 = vlaneseq
        %v1030 = vshrl.u32 %v1029, 7
        %v1031 = vsub.s32 0, %v1030
        %v1032 = vrot.slane %v1022, %v1031
        %v1033 = vlaneseq
        %v1034 = vshrl.u32 %v1033, 7
        %v1035 = vsub.s32 0, %v1034
        %v1036 = vrot.slane %v1023, %v1035
        %v1037 = vmul.f32 %v1027, %v1032
        %v1038 = vmul.f32 %v1027, %v1036
        %v1039 = vadd.f32 %v1014, %v1037
        %v1040 = vadd.f32 %v1014, %v1038
        %1041 = vset.pattern.permute.xlu0 1
        %1042 = vperm.xlu0 %1041, %v1009
        %v1043 = vpop.permute.xlu0 %1042
        %v1045 = vlaneseq
        %v1046 = vshrl.u32 %v1045, 7
        %v1047 = vsub.s32 1, %v1046
        %v1048 = vrot.slane %v1022, %v1047
        %v1049 = vlaneseq
        %v1050 = vshrl.u32 %v1049, 7
        %v1051 = vsub.s32 1, %v1050
        %v1052 = vrot.slane %v1023, %v1051
        %v1053 = vmul.f32 %v1043, %v1048
        %v1054 = vmul.f32 %v1043, %v1052
        %v1055 = vadd.f32 %v1039, %v1053
        %v1056 = vadd.f32 %v1040, %v1054
        %1057 = vset.pattern.permute.xlu0 2
        %1058 = vperm.xlu0 %1057, %v1009
        %v1059 = vpop.permute.xlu0 %1058
        %v1061 = vlaneseq
        %v1062 = vshrl.u32 %v1061, 7
        %v1063 = vsub.s32 2, %v1062
        %v1064 = vrot.slane %v1022, %v1063
        %v1065 = vlaneseq
        %v1066 = vshrl.u32 %v1065, 7
        %v1067 = vsub.s32 2, %v1066
        %v1068 = vrot.slane %v1023, %v1067
        %v1069 = vmul.f32 %v1059, %v1064
        %v1070 = vmul.f32 %v1059, %v1068
        %v1071 = vadd.f32 %v1055, %v1069
        %v1072 = vadd.f32 %v1056, %v1070
        %1073 = vset.pattern.permute.xlu0 3
        %1074 = vperm.xlu0 %1073, %v1009
        %v1075 = vpop.permute.xlu0 %1074
        %v1077 = vlaneseq
        %v1078 = vshrl.u32 %v1077, 7
        %v1079 = vsub.s32 3, %v1078
        %v1080 = vrot.slane %v1022, %v1079
        %v1081 = vlaneseq
        %v1082 = vshrl.u32 %v1081, 7
        %v1083 = vsub.s32 3, %v1082
        %v1084 = vrot.slane %v1023, %v1083
        %v1085 = vmul.f32 %v1075, %v1080
        %v1086 = vmul.f32 %v1075, %v1084
        %v1087 = vadd.f32 %v1071, %v1085
        %v1088 = vadd.f32 %v1072, %v1086
        %1089 = vrot.lane.b32.xlu0 %v1007, 16
        %v1090 = vpop.permute.xlu0 %1089
        %1091 = vrot.lane.b32.xlu0 %v1008, 16
        %v1092 = vpop.permute.xlu0 %1091
        %v1093 = vsel %vm396, %v1090, %v1092
        %v1094 = vsel %vm396, %v1092, %v1090
        %v1095 = vmul.f32 %v1094, %v272
        %v1096 = vmul.f32 %v1093, %v273
        %1097 = vset.pattern.permute.xlu0 4
        %1098 = vperm.xlu0 %1097, %v1009
        %v1099 = vpop.permute.xlu0 %1098
        %v1101 = vlaneseq
        %v1102 = vshrl.u32 %v1101, 7
        %v1103 = vsub.s32 0, %v1102
        %v1104 = vrot.slane %v1095, %v1103
        %v1105 = vlaneseq
        %v1106 = vshrl.u32 %v1105, 7
        %v1107 = vsub.s32 0, %v1106
        %v1108 = vrot.slane %v1096, %v1107
        %v1109 = vmul.f32 %v1099, %v1104
        %v1110 = vmul.f32 %v1099, %v1108
        %v1111 = vadd.f32 %v1087, %v1109
        %v1112 = vadd.f32 %v1088, %v1110
        %1113 = vset.pattern.permute.xlu0 5
        %1114 = vperm.xlu0 %1113, %v1009
        %v1115 = vpop.permute.xlu0 %1114
        %v1117 = vlaneseq
        %v1118 = vshrl.u32 %v1117, 7
        %v1119 = vsub.s32 1, %v1118
        %v1120 = vrot.slane %v1095, %v1119
        %v1121 = vlaneseq
        %v1122 = vshrl.u32 %v1121, 7
        %v1123 = vsub.s32 1, %v1122
        %v1124 = vrot.slane %v1096, %v1123
        %v1125 = vmul.f32 %v1115, %v1120
        %v1126 = vmul.f32 %v1115, %v1124
        %v1127 = vadd.f32 %v1111, %v1125
        %v1128 = vadd.f32 %v1112, %v1126
        %1129 = vset.pattern.permute.xlu0 6
        %1130 = vperm.xlu0 %1129, %v1009
        %v1131 = vpop.permute.xlu0 %1130
        %v1133 = vlaneseq
        %v1134 = vshrl.u32 %v1133, 7
        %v1135 = vsub.s32 2, %v1134
        %v1136 = vrot.slane %v1095, %v1135
        %v1137 = vlaneseq
        %v1138 = vshrl.u32 %v1137, 7
        %v1139 = vsub.s32 2, %v1138
        %v1140 = vrot.slane %v1096, %v1139
        %v1141 = vmul.f32 %v1131, %v1136
        %v1142 = vmul.f32 %v1131, %v1140
        %v1143 = vadd.f32 %v1127, %v1141
        %v1144 = vadd.f32 %v1128, %v1142
        %1145 = vset.pattern.permute.xlu0 7
        %1146 = vperm.xlu0 %1145, %v1009
        %v1147 = vpop.permute.xlu0 %1146
        %v1149 = vlaneseq
        %v1150 = vshrl.u32 %v1149, 7
        %v1151 = vsub.s32 3, %v1150
        %v1152 = vrot.slane %v1095, %v1151
        %v1153 = vlaneseq
        %v1154 = vshrl.u32 %v1153, 7
        %v1155 = vsub.s32 3, %v1154
        %v1156 = vrot.slane %v1096, %v1155
        %v1157 = vmul.f32 %v1147, %v1152
        %v1158 = vmul.f32 %v1147, %v1156
        %v1159 = vadd.f32 %v1143, %v1157
        %v1160 = vadd.f32 %v1144, %v1158
        %1161 = vrot.lane.b32.xlu0 %v1007, 15
        %v1162 = vpop.permute.xlu0 %1161
        %1163 = vrot.lane.b32.xlu0 %v1008, 15
        %v1164 = vpop.permute.xlu0 %1163
        %v1165 = vsel %vm469, %v1162, %v1164
        %v1166 = vsel %vm469, %v1164, %v1162
        %v1167 = vmul.f32 %v1166, %v280
        %v1168 = vmul.f32 %v1165, %v281
        %1169 = vset.pattern.permute.xlu0 8
        %1170 = vperm.xlu0 %1169, %v1009
        %v1171 = vpop.permute.xlu0 %1170
        %v1173 = vlaneseq
        %v1174 = vshrl.u32 %v1173, 7
        %v1175 = vsub.s32 0, %v1174
        %v1176 = vrot.slane %v1167, %v1175
        %v1177 = vlaneseq
        %v1178 = vshrl.u32 %v1177, 7
        %v1179 = vsub.s32 0, %v1178
        %v1180 = vrot.slane %v1168, %v1179
        %v1181 = vmul.f32 %v1171, %v1176
        %v1182 = vmul.f32 %v1171, %v1180
        %v1183 = vadd.f32 %v1159, %v1181
        %v1184 = vadd.f32 %v1160, %v1182
        %1185 = vset.pattern.permute.xlu0 9
        %1186 = vperm.xlu0 %1185, %v1009
        %v1187 = vpop.permute.xlu0 %1186
        %v1189 = vlaneseq
        %v1190 = vshrl.u32 %v1189, 7
        %v1191 = vsub.s32 1, %v1190
        %v1192 = vrot.slane %v1167, %v1191
        %v1193 = vlaneseq
        %v1194 = vshrl.u32 %v1193, 7
        %v1195 = vsub.s32 1, %v1194
        %v1196 = vrot.slane %v1168, %v1195
        %v1197 = vmul.f32 %v1187, %v1192
        %v1198 = vmul.f32 %v1187, %v1196
        %v1199 = vadd.f32 %v1183, %v1197
        %v1200 = vadd.f32 %v1184, %v1198
        %1201 = vset.pattern.permute.xlu0 10
        %1202 = vperm.xlu0 %1201, %v1009
        %v1203 = vpop.permute.xlu0 %1202
        %v1205 = vlaneseq
        %v1206 = vshrl.u32 %v1205, 7
        %v1207 = vsub.s32 2, %v1206
        %v1208 = vrot.slane %v1167, %v1207
        %v1209 = vlaneseq
        %v1210 = vshrl.u32 %v1209, 7
        %v1211 = vsub.s32 2, %v1210
        %v1212 = vrot.slane %v1168, %v1211
        %v1213 = vmul.f32 %v1203, %v1208
        %v1214 = vmul.f32 %v1203, %v1212
        %v1215 = vadd.f32 %v1199, %v1213
        %v1216 = vadd.f32 %v1200, %v1214
        %1217 = vset.pattern.permute.xlu0 11
        %1218 = vperm.xlu0 %1217, %v1009
        %v1219 = vpop.permute.xlu0 %1218
        %v1221 = vlaneseq
        %v1222 = vshrl.u32 %v1221, 7
        %v1223 = vsub.s32 3, %v1222
        %v1224 = vrot.slane %v1167, %v1223
        %v1225 = vlaneseq
        %v1226 = vshrl.u32 %v1225, 7
        %v1227 = vsub.s32 3, %v1226
        %v1228 = vrot.slane %v1168, %v1227
        %v1229 = vmul.f32 %v1219, %v1224
        %v1230 = vmul.f32 %v1219, %v1228
        %v1231 = vadd.f32 %v1215, %v1229
        %v1232 = vadd.f32 %v1216, %v1230
        %1233 = vrot.lane.b32.xlu0 %v1007, 1
        %v1234 = vpop.permute.xlu0 %1233
        %1235 = vrot.lane.b32.xlu0 %v1008, 1
        %v1236 = vpop.permute.xlu0 %1235
        %v1237 = vsel %vm542, %v1234, %v1236
        %v1238 = vsel %vm542, %v1236, %v1234
        %v1239 = vmul.f32 %v1238, %v284
        %v1240 = vmul.f32 %v1237, %v285
        %1241 = vset.pattern.permute.xlu0 12
        %1242 = vperm.xlu0 %1241, %v1009
        %v1243 = vpop.permute.xlu0 %1242
        %v1245 = vlaneseq
        %v1246 = vshrl.u32 %v1245, 7
        %v1247 = vsub.s32 0, %v1246
        %v1248 = vrot.slane %v1239, %v1247
        %v1249 = vlaneseq
        %v1250 = vshrl.u32 %v1249, 7
        %v1251 = vsub.s32 0, %v1250
        %v1252 = vrot.slane %v1240, %v1251
        %v1253 = vmul.f32 %v1243, %v1248
        %v1254 = vmul.f32 %v1243, %v1252
        %v1255 = vadd.f32 %v1231, %v1253
        %v1256 = vadd.f32 %v1232, %v1254
        %1257 = vset.pattern.permute.xlu0 13
        %1258 = vperm.xlu0 %1257, %v1009
        %v1259 = vpop.permute.xlu0 %1258
        %v1261 = vlaneseq
        %v1262 = vshrl.u32 %v1261, 7
        %v1263 = vsub.s32 1, %v1262
        %v1264 = vrot.slane %v1239, %v1263
        %v1265 = vlaneseq
        %v1266 = vshrl.u32 %v1265, 7
        %v1267 = vsub.s32 1, %v1266
        %v1268 = vrot.slane %v1240, %v1267
        %v1269 = vmul.f32 %v1259, %v1264
        %v1270 = vmul.f32 %v1259, %v1268
        %v1271 = vadd.f32 %v1255, %v1269
        %v1272 = vadd.f32 %v1256, %v1270
        %1273 = vset.pattern.permute.xlu0 14
        %1274 = vperm.xlu0 %1273, %v1009
        %v1275 = vpop.permute.xlu0 %1274
        %v1277 = vlaneseq
        %v1278 = vshrl.u32 %v1277, 7
        %v1279 = vsub.s32 2, %v1278
        %v1280 = vrot.slane %v1239, %v1279
        %v1281 = vlaneseq
        %v1282 = vshrl.u32 %v1281, 7
        %v1283 = vsub.s32 2, %v1282
        %v1284 = vrot.slane %v1240, %v1283
        %v1285 = vmul.f32 %v1275, %v1280
        %v1286 = vmul.f32 %v1275, %v1284
        %v1287 = vadd.f32 %v1271, %v1285
        %v1288 = vadd.f32 %v1272, %v1286
        %1289 = vset.pattern.permute.xlu0 15
        %1290 = vperm.xlu0 %1289, %v1009
        %v1291 = vpop.permute.xlu0 %1290
        %v1293 = vlaneseq
        %v1294 = vshrl.u32 %v1293, 7
        %v1295 = vsub.s32 3, %v1294
        %v1296 = vrot.slane %v1239, %v1295
        %v1297 = vlaneseq
        %v1298 = vshrl.u32 %v1297, 7
        %v1299 = vsub.s32 3, %v1298
        %v1300 = vrot.slane %v1240, %v1299
        %v1301 = vmul.f32 %v1291, %v1296
        %v1302 = vmul.f32 %v1291, %v1300
        %v1303 = vadd.f32 %v1287, %v1301
        %v1304 = vadd.f32 %v1288, %v1302
        %1305 = vset.pattern.permute.xlu0 16
        %1306 = vperm.xlu0 %1305, %v1009
        %v1307 = vpop.permute.xlu0 %1306
        %v1309 = vlaneseq
        %v1310 = vshrl.u32 %v1309, 7
        %v1311 = vsub.s32 0, %v1310
        %v1312 = vrot.slane %v1007, %v1311
        %v1313 = vlaneseq
        %v1314 = vshrl.u32 %v1313, 7
        %v1315 = vsub.s32 0, %v1314
        %v1316 = vrot.slane %v1008, %v1315
        %v1317 = vmul.f32 %v1307, %v1312
        %v1318 = vmul.f32 %v1307, %v1316
        %v1319 = vadd.f32 %v1303, %v1317
        %v1320 = vadd.f32 %v1304, %v1318
        %1321 = vset.pattern.permute.xlu0 17
        %1322 = vperm.xlu0 %1321, %v1009
        %v1323 = vpop.permute.xlu0 %1322
        %v1325 = vlaneseq
        %v1326 = vshrl.u32 %v1325, 7
        %v1327 = vsub.s32 1, %v1326
        %v1328 = vrot.slane %v1007, %v1327
        %v1329 = vlaneseq
        %v1330 = vshrl.u32 %v1329, 7
        %v1331 = vsub.s32 1, %v1330
        %v1332 = vrot.slane %v1008, %v1331
        %v1333 = vmul.f32 %v1323, %v1328
        %v1334 = vmul.f32 %v1323, %v1332
        %v1335 = vadd.f32 %v1319, %v1333
        %v1336 = vadd.f32 %v1320, %v1334
        %1337 = vset.pattern.permute.xlu0 18
        %1338 = vperm.xlu0 %1337, %v1009
        %v1339 = vpop.permute.xlu0 %1338
        %v1341 = vlaneseq
        %v1342 = vshrl.u32 %v1341, 7
        %v1343 = vsub.s32 2, %v1342
        %v1344 = vrot.slane %v1007, %v1343
        %v1345 = vlaneseq
        %v1346 = vshrl.u32 %v1345, 7
        %v1347 = vsub.s32 2, %v1346
        %v1348 = vrot.slane %v1008, %v1347
        %v1349 = vmul.f32 %v1339, %v1344
        %v1350 = vmul.f32 %v1339, %v1348
        %v1351 = vadd.f32 %v1335, %v1349
        %v1352 = vadd.f32 %v1336, %v1350
        %1353 = vset.pattern.permute.xlu0 19
        %1354 = vperm.xlu0 %1353, %v1009
        %v1355 = vpop.permute.xlu0 %1354
        %v1357 = vlaneseq
        %v1358 = vshrl.u32 %v1357, 7
        %v1359 = vsub.s32 3, %v1358
        %v1360 = vrot.slane %v1007, %v1359
        %v1361 = vlaneseq
        %v1362 = vshrl.u32 %v1361, 7
        %v1363 = vsub.s32 3, %v1362
        %v1364 = vrot.slane %v1008, %v1363
        %v1365 = vmul.f32 %v1355, %v1360
        %v1366 = vmul.f32 %v1355, %v1364
        %v1367 = vadd.f32 %v1351, %v1365
        %v1368 = vadd.f32 %v1352, %v1366
        %1369 = vrot.lane.b32.xlu0 %v1007, 127
        %v1370 = vpop.permute.xlu0 %1369
        %1371 = vrot.lane.b32.xlu0 %v1008, 127
        %v1372 = vpop.permute.xlu0 %1371
        %v1373 = vsel %vm719, %v1370, %v1372
        %v1374 = vsel %vm719, %v1372, %v1370
        %v1375 = vmul.f32 %v1373, %v288
        %v1376 = vmul.f32 %v1374, %v289
        %1377 = vset.pattern.permute.xlu0 20
        %1378 = vperm.xlu0 %1377, %v1009
        %v1379 = vpop.permute.xlu0 %1378
        %v1381 = vlaneseq
        %v1382 = vshrl.u32 %v1381, 7
        %v1383 = vsub.s32 0, %v1382
        %v1384 = vrot.slane %v1375, %v1383
        %v1385 = vlaneseq
        %v1386 = vshrl.u32 %v1385, 7
        %v1387 = vsub.s32 0, %v1386
        %v1388 = vrot.slane %v1376, %v1387
        %v1389 = vmul.f32 %v1379, %v1384
        %v1390 = vmul.f32 %v1379, %v1388
        %v1391 = vadd.f32 %v1367, %v1389
        %v1392 = vadd.f32 %v1368, %v1390
        %1393 = vset.pattern.permute.xlu0 21
        %1394 = vperm.xlu0 %1393, %v1009
        %v1395 = vpop.permute.xlu0 %1394
        %v1397 = vlaneseq
        %v1398 = vshrl.u32 %v1397, 7
        %v1399 = vsub.s32 1, %v1398
        %v1400 = vrot.slane %v1375, %v1399
        %v1401 = vlaneseq
        %v1402 = vshrl.u32 %v1401, 7
        %v1403 = vsub.s32 1, %v1402
        %v1404 = vrot.slane %v1376, %v1403
        %v1405 = vmul.f32 %v1395, %v1400
        %v1406 = vmul.f32 %v1395, %v1404
        %v1407 = vadd.f32 %v1391, %v1405
        %v1408 = vadd.f32 %v1392, %v1406
        %1409 = vset.pattern.permute.xlu0 22
        %1410 = vperm.xlu0 %1409, %v1009
        %v1411 = vpop.permute.xlu0 %1410
        %v1413 = vlaneseq
        %v1414 = vshrl.u32 %v1413, 7
        %v1415 = vsub.s32 2, %v1414
        %v1416 = vrot.slane %v1375, %v1415
        %v1417 = vlaneseq
        %v1418 = vshrl.u32 %v1417, 7
        %v1419 = vsub.s32 2, %v1418
        %v1420 = vrot.slane %v1376, %v1419
        %v1421 = vmul.f32 %v1411, %v1416
        %v1422 = vmul.f32 %v1411, %v1420
        %v1423 = vadd.f32 %v1407, %v1421
        %v1424 = vadd.f32 %v1408, %v1422
        %1425 = vset.pattern.permute.xlu0 23
        %1426 = vperm.xlu0 %1425, %v1009
        %v1427 = vpop.permute.xlu0 %1426
        %v1429 = vlaneseq
        %v1430 = vshrl.u32 %v1429, 7
        %v1431 = vsub.s32 3, %v1430
        %v1432 = vrot.slane %v1375, %v1431
        %v1433 = vlaneseq
        %v1434 = vshrl.u32 %v1433, 7
        %v1435 = vsub.s32 3, %v1434
        %v1436 = vrot.slane %v1376, %v1435
        %v1437 = vmul.f32 %v1427, %v1432
        %v1438 = vmul.f32 %v1427, %v1436
        %v1439 = vadd.f32 %v1423, %v1437
        %v1440 = vadd.f32 %v1424, %v1438
        %1441 = vrot.lane.b32.xlu0 %v1007, 113
        %v1442 = vpop.permute.xlu0 %1441
        %1443 = vrot.lane.b32.xlu0 %v1008, 113
        %v1444 = vpop.permute.xlu0 %1443
        %v1445 = vsel %vm792, %v1442, %v1444
        %v1446 = vsel %vm792, %v1444, %v1442
        %v1447 = vmul.f32 %v1445, %v296
        %v1448 = vmul.f32 %v1446, %v297
        %1449 = vset.pattern.permute.xlu0 24
        %1450 = vperm.xlu0 %1449, %v1009
        %v1451 = vpop.permute.xlu0 %1450
        %v1453 = vlaneseq
        %v1454 = vshrl.u32 %v1453, 7
        %v1455 = vsub.s32 0, %v1454
        %v1456 = vrot.slane %v1447, %v1455
        %v1457 = vlaneseq
        %v1458 = vshrl.u32 %v1457, 7
        %v1459 = vsub.s32 0, %v1458
        %v1460 = vrot.slane %v1448, %v1459
        %v1461 = vmul.f32 %v1451, %v1456
        %v1462 = vmul.f32 %v1451, %v1460
        %v1463 = vadd.f32 %v1439, %v1461
        %v1464 = vadd.f32 %v1440, %v1462
        %1465 = vset.pattern.permute.xlu0 25
        %1466 = vperm.xlu0 %1465, %v1009
        %v1467 = vpop.permute.xlu0 %1466
        %v1469 = vlaneseq
        %v1470 = vshrl.u32 %v1469, 7
        %v1471 = vsub.s32 1, %v1470
        %v1472 = vrot.slane %v1447, %v1471
        %v1473 = vlaneseq
        %v1474 = vshrl.u32 %v1473, 7
        %v1475 = vsub.s32 1, %v1474
        %v1476 = vrot.slane %v1448, %v1475
        %v1477 = vmul.f32 %v1467, %v1472
        %v1478 = vmul.f32 %v1467, %v1476
        %v1479 = vadd.f32 %v1463, %v1477
        %v1480 = vadd.f32 %v1464, %v1478
        %1481 = vset.pattern.permute.xlu0 26
        %1482 = vperm.xlu0 %1481, %v1009
        %v1483 = vpop.permute.xlu0 %1482
        %v1485 = vlaneseq
        %v1486 = vshrl.u32 %v1485, 7
        %v1487 = vsub.s32 2, %v1486
        %v1488 = vrot.slane %v1447, %v1487
        %v1489 = vlaneseq
        %v1490 = vshrl.u32 %v1489, 7
        %v1491 = vsub.s32 2, %v1490
        %v1492 = vrot.slane %v1448, %v1491
        %v1493 = vmul.f32 %v1483, %v1488
        %v1494 = vmul.f32 %v1483, %v1492
        %v1495 = vadd.f32 %v1479, %v1493
        %v1496 = vadd.f32 %v1480, %v1494
        %1497 = vset.pattern.permute.xlu0 27
        %1498 = vperm.xlu0 %1497, %v1009
        %v1499 = vpop.permute.xlu0 %1498
        %v1501 = vlaneseq
        %v1502 = vshrl.u32 %v1501, 7
        %v1503 = vsub.s32 3, %v1502
        %v1504 = vrot.slane %v1447, %v1503
        %v1505 = vlaneseq
        %v1506 = vshrl.u32 %v1505, 7
        %v1507 = vsub.s32 3, %v1506
        %v1508 = vrot.slane %v1448, %v1507
        %v1509 = vmul.f32 %v1499, %v1504
        %v1510 = vmul.f32 %v1499, %v1508
        %v1511 = vadd.f32 %v1495, %v1509
        %v1512 = vadd.f32 %v1496, %v1510
        %1513 = vrot.lane.b32.xlu0 %v1007, 112
        %v1514 = vpop.permute.xlu0 %1513
        %1515 = vrot.lane.b32.xlu0 %v1008, 112
        %v1516 = vpop.permute.xlu0 %1515
        %v1517 = vsel %vm865, %v1514, %v1516
        %v1518 = vsel %vm865, %v1516, %v1514
        %v1519 = vmul.f32 %v1517, %v300
        %v1520 = vmul.f32 %v1518, %v301
        %1521 = vset.pattern.permute.xlu0 28
        %1522 = vperm.xlu0 %1521, %v1009
        %v1523 = vpop.permute.xlu0 %1522
        %v1525 = vlaneseq
        %v1526 = vshrl.u32 %v1525, 7
        %v1527 = vsub.s32 0, %v1526
        %v1528 = vrot.slane %v1519, %v1527
        %v1529 = vlaneseq
        %v1530 = vshrl.u32 %v1529, 7
        %v1531 = vsub.s32 0, %v1530
        %v1532 = vrot.slane %v1520, %v1531
        %v1533 = vmul.f32 %v1523, %v1528
        %v1534 = vmul.f32 %v1523, %v1532
        %v1535 = vadd.f32 %v1511, %v1533
        %v1536 = vadd.f32 %v1512, %v1534
        %1537 = vset.pattern.permute.xlu0 29
        %1538 = vperm.xlu0 %1537, %v1009
        %v1539 = vpop.permute.xlu0 %1538
        %v1541 = vlaneseq
        %v1542 = vshrl.u32 %v1541, 7
        %v1543 = vsub.s32 1, %v1542
        %v1544 = vrot.slane %v1519, %v1543
        %v1545 = vlaneseq
        %v1546 = vshrl.u32 %v1545, 7
        %v1547 = vsub.s32 1, %v1546
        %v1548 = vrot.slane %v1520, %v1547
        %v1549 = vmul.f32 %v1539, %v1544
        %v1550 = vmul.f32 %v1539, %v1548
        %v1551 = vadd.f32 %v1535, %v1549
        %v1552 = vadd.f32 %v1536, %v1550
        %1553 = vset.pattern.permute.xlu0 30
        %1554 = vperm.xlu0 %1553, %v1009
        %v1555 = vpop.permute.xlu0 %1554
        %v1557 = vlaneseq
        %v1558 = vshrl.u32 %v1557, 7
        %v1559 = vsub.s32 2, %v1558
        %v1560 = vrot.slane %v1519, %v1559
        %v1561 = vlaneseq
        %v1562 = vshrl.u32 %v1561, 7
        %v1563 = vsub.s32 2, %v1562
        %v1564 = vrot.slane %v1520, %v1563
        %v1565 = vmul.f32 %v1555, %v1560
        %v1566 = vmul.f32 %v1555, %v1564
        %v1567 = vadd.f32 %v1551, %v1565
        %v1568 = vadd.f32 %v1552, %v1566
        %1569 = vset.pattern.permute.xlu0 31
        %1570 = vperm.xlu0 %1569, %v1009
        %v1571 = vpop.permute.xlu0 %1570
        %v1573 = vlaneseq
        %v1574 = vshrl.u32 %v1573, 7
        %v1575 = vsub.s32 3, %v1574
        %v1576 = vrot.slane %v1519, %v1575
        %v1577 = vlaneseq
        %v1578 = vshrl.u32 %v1577, 7
        %v1579 = vsub.s32 3, %v1578
        %v1580 = vrot.slane %v1520, %v1579
        %v1581 = vmul.f32 %v1571, %v1576
        %v1582 = vmul.f32 %v1571, %v1580
        %v1583 = vadd.f32 %v1567, %v1581
        %v1584 = vadd.f32 %v1568, %v1582
        %1585 = vrot.lane.b32.xlu0 %v1007, 111
        %v1586 = vpop.permute.xlu0 %1585
        %1587 = vrot.lane.b32.xlu0 %v1008, 111
        %v1588 = vpop.permute.xlu0 %1587
        %v1589 = vsel %vm938, %v1586, %v1588
        %v1590 = vsel %vm938, %v1588, %v1586
        %v1591 = vmul.f32 %v1589, %v306
        %v1592 = vmul.f32 %v1590, %v307
        %1593 = vset.pattern.permute.xlu0 32
        %1594 = vperm.xlu0 %1593, %v1009
        %v1595 = vpop.permute.xlu0 %1594
        %v1597 = vlaneseq
        %v1598 = vshrl.u32 %v1597, 7
        %v1599 = vsub.s32 0, %v1598
        %v1600 = vrot.slane %v1591, %v1599
        %v1601 = vlaneseq
        %v1602 = vshrl.u32 %v1601, 7
        %v1603 = vsub.s32 0, %v1602
        %v1604 = vrot.slane %v1592, %v1603
        %v1605 = vmul.f32 %v1595, %v1600
        %v1606 = vmul.f32 %v1595, %v1604
        %v1607 = vadd.f32 %v1583, %v1605
        %v1608 = vadd.f32 %v1584, %v1606
        %1609 = vset.pattern.permute.xlu0 33
        %1610 = vperm.xlu0 %1609, %v1009
        %v1611 = vpop.permute.xlu0 %1610
        %v1613 = vlaneseq
        %v1614 = vshrl.u32 %v1613, 7
        %v1615 = vsub.s32 1, %v1614
        %v1616 = vrot.slane %v1591, %v1615
        %v1617 = vlaneseq
        %v1618 = vshrl.u32 %v1617, 7
        %v1619 = vsub.s32 1, %v1618
        %v1620 = vrot.slane %v1592, %v1619
        %v1621 = vmul.f32 %v1611, %v1616
        %v1622 = vmul.f32 %v1611, %v1620
        %v1623 = vadd.f32 %v1607, %v1621
        %v1624 = vadd.f32 %v1608, %v1622
        %1625 = vset.pattern.permute.xlu0 34
        %1626 = vperm.xlu0 %1625, %v1009
        %v1627 = vpop.permute.xlu0 %1626
        %v1629 = vlaneseq
        %v1630 = vshrl.u32 %v1629, 7
        %v1631 = vsub.s32 2, %v1630
        %v1632 = vrot.slane %v1591, %v1631
        %v1633 = vlaneseq
        %v1634 = vshrl.u32 %v1633, 7
        %v1635 = vsub.s32 2, %v1634
        %v1636 = vrot.slane %v1592, %v1635
        %v1637 = vmul.f32 %v1627, %v1632
        %v1638 = vmul.f32 %v1627, %v1636
        %v1639 = vadd.f32 %v1623, %v1637
        %v1640 = vadd.f32 %v1624, %v1638
        %1641 = vset.pattern.permute.xlu0 35
        %1642 = vperm.xlu0 %1641, %v1009
        %v1643 = vpop.permute.xlu0 %1642
        %v1645 = vlaneseq
        %v1646 = vshrl.u32 %v1645, 7
        %v1647 = vsub.s32 3, %v1646
        %v1648 = vrot.slane %v1591, %v1647
        %v1649 = vlaneseq
        %v1650 = vshrl.u32 %v1649, 7
        %v1651 = vsub.s32 3, %v1650
        %v1652 = vrot.slane %v1592, %v1651
        %v1653 = vmul.f32 %v1643, %v1648
        %v1654 = vmul.f32 %v1643, %v1652
        %v1655 = vadd.f32 %v1639, %v1653
        %v1656 = vadd.f32 %v1640, %v1654
        %v1657 = vadd.f32 %v1655, %v241
        %v1658 = vadd.f32 %v1656, %v316
        %v1661 = vcombine.low %v1657, %v1658
        %1663 = vst [vmem:[%s240] sm:$0xff] %v1661
        %s1664 = sand.u32 %s140, 1
        %s1665 = scalar_lea.sflag [#allocation4], %s1664
        %s1666 = sand.u32 %s140, 1
        %s1667 = smul.addr %s1666, 8
        %s1668 = scalar_lea.vmem [#allocation5], %s1667
        // Predicated region
        $region45: #{tpu_custom_call.1} parent=39 // pred_check
          %p1669 = pneg %p150
        $region46: #{tpu_custom_call.1} parent=39 // pred_check_branch
          %1671 = sbr.rel (%p1669) target = $region48
        $region47: #{tpu_custom_call.1} parent=39 // pred_region
          %s1673 = ssub.s32 128, 128
          %1674 = vsyncadd %s1665, %s1673
          %s1675 = smul.addr %s22, 2
          %s1676 = smul.addr %s1675, 64
          %s1677 = scalar_lea.hbm %s5, %s1676
          %s1679 = sshll.u32 %s1668, 4
          %s1680 = int_to_ptr.vmem [resolvable:$true] %s1679
          %1682 = dma.vmem_to_hbm [thread:$0]  %s1680, 128, %s1677, %s1665
        $region48: #{tpu_custom_call.1} parent=39 // pred_fallthru
          _
      $region40: #{tpu_custom_call.1} parent=5 // pred_fallthru
        _
      %p1683 = scmp.le.s32.totalorder 2, %s17
      // Predicated region
      $region49: #{tpu_custom_call.1} parent=5 // pred_check
        %p1684 = pneg %p1683
      $region50: #{tpu_custom_call.1} parent=5 // pred_check_branch
        %1686 = sbr.rel (%p1684) target = $region52
      $region51: #{tpu_custom_call.1} parent=5 // pred_region
        %s1687 = ssub.s32 %s17, 2
        // Predicated region
        $region53: #{tpu_custom_call.1} parent=51 // pred_check
          %p1688 = pneg %p156
        $region54: #{tpu_custom_call.1} parent=51 // pred_check_branch
          %1690 = sbr.rel (%p1688) target = $region56
        $region55: #{tpu_custom_call.1} parent=51 // pred_region
          %s1691 = sand.u32 %s141, 1
          %s1692 = scalar_lea.sflag [#allocation4], %s1691
          %s1693 = sand.u32 %s141, 1
          %s1694 = smul.addr %s1693, 8
          %s1695 = scalar_lea.vmem [#allocation5], %s1694
          %1696 = dma.done %s1692, 128
        $region56: #{tpu_custom_call.1} parent=51 // pred_fallthru
          _
      $region52: #{tpu_custom_call.1} parent=5 // pred_fallthru
        _
    $region6: #{tpu_custom_call.1} parent=1 // loop_footer
      %s21 = sadd.s32 1, %s17
    $region7: #{tpu_custom_call.1} parent=1 // loop_footer_branch
      %16 = sbr.rel target = $region3
    $region8: #{tpu_custom_call.1} parent=1 // loop_exit
      _
    %1697 = vsyncpa [#allocation3], 1
    %s1698 = scalar_lea.sflag [#allocation3], 1
    %1699 = vsyncpa %s1698, 1
    %1700 = vsyncpa [#allocation4], 1
    %s1701 = scalar_lea.sflag [#allocation4], 1
    %1702 = vsyncpa %s1701, 1

</llo_original>
